<compile_context>
chip_gen: v7x
topology: tpu7x:2x2x1
jax: 0.10.0
libtpu: 0.0.40
codegen_flags: <defaults>
</compile_context>

<pallas_src>
import functools

import jax
import jax.numpy as jnp
from jax.experimental import pallas as pl
from jax.experimental.pallas import tpu as pltpu


# ------------------------------ helpers ---------------------------------------

_SEQ_TILE = 256  # sequences are padded to a multiple of this


def _round_up(x, m):
    return ((x + m - 1) // m) * m


def _pick(dim, prefs):
    """Largest preferred tile that divides dim, else the full dim."""
    for p in prefs:
        if p <= dim and dim % p == 0:
            return p
    return dim


def _vmem_limit_bytes():
    try:
        cap = pltpu.get_tpu_info().vmem_capacity_bytes
    except Exception:
        cap = 128 * 1024 * 1024
    # 16 MiB headroom for compiler scratch; cap at 100 MiB (v5e/v6e), ~48 MiB on v7x.
    return int(min(max(cap - 16 * 1024 * 1024, 32 * 1024 * 1024), 100 * 1024 * 1024))


_VMEM_LIMIT = _vmem_limit_bytes()


# ------------------------------ Pallas kernels --------------------------------


def _rmsnorm_kernel(x_ref, g_ref, o_ref, *, eps):
    x = x_ref[...].astype(jnp.float32)
    var = jnp.mean(x * x, axis=-1, keepdims=True)
    o_ref[...] = (x * jax.lax.rsqrt(var + eps)
                  * g_ref[...].astype(jnp.float32)).astype(o_ref.dtype)


def _rms_matmul_kernel(x_ref, g_ref, w_ref, o_ref, xn_ref, *, eps):
    # Fused RMSNorm + projection.  The normalized row tile is computed once per
    # row tile (j == 0, j innermost) into VMEM scratch and reused for all N tiles.
    @pl.when(pl.program_id(1) == 0)
    def _():
        x = x_ref[...].astype(jnp.float32)
        var = jnp.mean(x * x, axis=-1, keepdims=True)
        xn_ref[...] = (x * jax.lax.rsqrt(var + eps)
                       * g_ref[...].astype(jnp.float32)).astype(xn_ref.dtype)

    o_ref[...] = jax.lax.dot_general(
        xn_ref[...], w_ref[...], (((1,), (1,)), ((), ())),
        preferred_element_type=jnp.float32).astype(o_ref.dtype)


def _rms_gate_kernel(x_ref, g_ref, wg_ref, xn_ref, logit_ref, *, eps):
    # ffn RMSNorm with the (tiny, lane-dense 128-wide) router projection fused in.
    x = x_ref[...].astype(jnp.float32)
    var = jnp.mean(x * x, axis=-1, keepdims=True)
    xn = (x * jax.lax.rsqrt(var + eps)
          * g_ref[...].astype(jnp.float32)).astype(xn_ref.dtype)
    xn_ref[...] = xn
    logit_ref[...] = jax.lax.dot_general(
        xn, wg_ref[...], (((1,), (1,)), ((), ())),
        preferred_element_type=jnp.float32)


def _matmul_res_kernel(x_ref, w_ref, r_ref, o_ref):
    # out = residual + x @ w.T   (w stored (N, K); full-K single step, f32 accum)
    acc = jax.lax.dot_general(x_ref[...], w_ref[...], (((1,), (1,)), ((), ())),
                              preferred_element_type=jnp.float32)
    o_ref[...] = (acc + r_ref[...].astype(jnp.float32)).astype(o_ref.dtype)


def _flash_kernel(q_ref, k_ref, v_ref, cq_ref, sq_ref, ck_ref, sk_ref, o_ref,
                  m_sc, l_sc, acc_sc, *, scale, tq, tkv, group, hd):
    # Grid: (kv_head, q_tile, kv_tile); kv_tile innermost reduction.
    # q_ref: (1, group, tq, hd); k/v: (1, tkv, hd); cos/sin: per-position tables.
    qi = pl.program_id(1)
    ki = pl.program_id(2)

    @pl.when(ki == 0)
    def _():
        m_sc[...] = jnp.full_like(m_sc, -1e30)
        l_sc[...] = jnp.zeros_like(l_sc)
        acc_sc[...] = jnp.zeros_like(acc_sc)

    q_start = qi * tq
    k_start = ki * tkv
    not_fully_masked = k_start <= q_start + (tq - 1)
    fully_visible = (k_start + tkv - 1) <= q_start

    def process(apply_mask):
        cos_k = ck_ref[...]
        sin_k = sk_ref[...]
        kf = k_ref[0].astype(jnp.float32)
        k_rot = (kf * cos_k
                 + pltpu.roll(kf, hd // 2, 1) * sin_k).astype(v_ref.dtype)
        v = v_ref[0]
        cos_q = cq_ref[...]
        sin_q = sq_ref[...]
        if apply_mask:
            q_idx = q_start + jax.lax.broadcasted_iota(jnp.int32, (tq, tkv), 0)
            k_idx = k_start + jax.lax.broadcasted_iota(jnp.int32, (tq, tkv), 1)
            neg = jnp.where(k_idx <= q_idx, 0.0, -1e30).astype(jnp.float32)
        for g in range(group):
            qf = q_ref[0, g].astype(jnp.float32)
            q_rot = ((qf * cos_q + pltpu.roll(qf, hd // 2, 1) * sin_q)
                     * scale).astype(v_ref.dtype)
            s = jax.lax.dot_general(q_rot, k_rot, (((1,), (1,)), ((), ())),
                                    preferred_element_type=jnp.float32)
            if apply_mask:
                s = s + neg
            m_prev = m_sc[g]
            m_new = jnp.maximum(m_prev, jnp.max(s, axis=-1, keepdims=True))
            alpha = jnp.exp(m_prev - m_new)
            p = jnp.exp(s - m_new)
            l_sc[g] = alpha * l_sc[g] + jnp.sum(p, axis=-1, keepdims=True)
            acc_sc[g] = alpha * acc_sc[g] + jax.lax.dot_general(
                p.astype(v.dtype), v, (((1,), (0,)), ((), ())),
                preferred_element_type=jnp.float32)
            m_sc[g] = m_new

    # Interior (fully visible) tiles skip the mask construction entirely.
    @pl.when(jnp.logical_and(not_fully_masked, fully_visible))
    def _():
        process(False)

    @pl.when(jnp.logical_and(not_fully_masked, jnp.logical_not(fully_visible)))
    def _():
        process(True)

    @pl.when(ki == pl.num_programs(2) - 1)
    def _():
        for g in range(group):
            o_ref[0, g] = (acc_sc[g] *
                           pl.reciprocal(l_sc[g], approx=False)).astype(o_ref.dtype)


def _moe_group_kernel(grp_ref, nvalid_ref, x_ref, w1_ref, w3_ref, w2_ref,
                      o_ref, acc_ref):
    # Grid: (token_tile, f_chunk).  Each token tile holds rows of a single expert
    # (megablocks-style grouping done in the wrapper); tile -> expert is scalar
    # prefetched (used by the weight index_maps).  Slack tiles skip all compute.
    t = pl.program_id(0)
    f = pl.program_id(1)

    @pl.when(f == 0)
    def _():
        acc_ref[...] = jnp.zeros_like(acc_ref)

    @pl.when(t < nvalid_ref[0])
    def _():
        x = x_ref[...]                      # (tm, H) bf16
        dn = (((1,), (1,)), ((), ()))
        h1 = jax.lax.dot_general(x, w1_ref[0], dn, preferred_element_type=jnp.float32)
        h3 = jax.lax.dot_general(x, w3_ref[0], dn, preferred_element_type=jnp.float32)
        act = h1 * (1.0 / (1.0 + jnp.exp(-h1))) * h3            # SiLU(xW1^T)*(xW3^T)
        acc_ref[...] += jnp.dot(act.astype(x.dtype), w2_ref[0],
                                preferred_element_type=jnp.float32)

    @pl.when(f == pl.num_programs(1) - 1)
    def _():
        o_ref[...] = acc_ref[...].astype(o_ref.dtype)


# ------------------------------ Pallas wrappers --------------------------------


def rmsnorm(x, gamma, eps, out_dtype=jnp.bfloat16):
    T, H = x.shape
    tm = _pick(T, [512, 256, 128, 64, 8])
    return pl.pallas_call(
        functools.partial(_rmsnorm_kernel, eps=eps),
        grid=(T // tm,),
        in_specs=[pl.BlockSpec((tm, H), lambda i: (i, 0)),
                  pl.BlockSpec((1, H), lambda i: (0, 0))],
        out_specs=pl.BlockSpec((tm, H), lambda i: (i, 0)),
        out_shape=jax.ShapeDtypeStruct((T, H), out_dtype),
        compiler_params=pltpu.CompilerParams(
            dimension_semantics=("parallel",), vmem_limit_bytes=_VMEM_LIMIT),
    )(x, gamma.reshape(1, -1))


def rmsnorm_matmul(x, gamma, w, eps, out_dtype=jnp.bfloat16):
    # out = RMSNorm(x; gamma) @ w.T   with w stored as (N, K)
    T, K = x.shape
    N = w.shape[0]
    tm = _pick(T, [512, 256, 128, 64, 8])
    tn = _pick(N, [512, 256, 128])
    return pl.pallas_call(
        functools.partial(_rms_matmul_kernel, eps=eps),
        grid=(T // tm, N // tn),
        in_specs=[pl.BlockSpec((tm, K), lambda i, j: (i, 0)),
                  pl.BlockSpec((1, K), lambda i, j: (0, 0)),
                  pl.BlockSpec((tn, K), lambda i, j: (j, 0))],
        out_specs=pl.BlockSpec((tm, tn), lambda i, j: (i, j)),
        out_shape=jax.ShapeDtypeStruct((T, N), out_dtype),
        scratch_shapes=[pltpu.VMEM((tm, K), jnp.bfloat16)],
        compiler_params=pltpu.CompilerParams(
            dimension_semantics=("parallel", "arbitrary"),
            vmem_limit_bytes=_VMEM_LIMIT),
    )(x, gamma.reshape(1, -1), w)


def rmsnorm_gate(x, gamma, wg, eps):
    # Returns (RMSNorm(x), RMSNorm(x) @ wg.T) in one pass over x.
    T, H = x.shape
    Ep = wg.shape[0]
    tm = _pick(T, [512, 256, 128, 64, 8])
    return pl.pallas_call(
        functools.partial(_rms_gate_kernel, eps=eps),
        grid=(T // tm,),
        in_specs=[pl.BlockSpec((tm, H), lambda i: (i, 0)),
                  pl.BlockSpec((1, H), lambda i: (0, 0)),
                  pl.BlockSpec((Ep, H), lambda i: (0, 0))],
        out_specs=(pl.BlockSpec((tm, H), lambda i: (i, 0)),
                   pl.BlockSpec((tm, Ep), lambda i: (i, 0))),
        out_shape=(jax.ShapeDtypeStruct((T, H), jnp.bfloat16),
                   jax.ShapeDtypeStruct((T, Ep), jnp.float32)),
        compiler_params=pltpu.CompilerParams(
            dimension_semantics=("parallel",), vmem_limit_bytes=_VMEM_LIMIT),
    )(x, gamma.reshape(1, -1), wg)


def matmul_nt_residual(x, w, residual, out_dtype=jnp.bfloat16):
    # out = residual + x @ w.T   with w stored (N, K); full-K blocks, no scratch.
    T, K = x.shape
    N = w.shape[0]
    tm = _pick(T, [512, 256, 128, 64, 8])
    tn = _pick(N, [512, 256, 128])
    return pl.pallas_call(
        _matmul_res_kernel,
        grid=(T // tm, N // tn),
        in_specs=[pl.BlockSpec((tm, K), lambda i, j: (i, 0)),
                  pl.BlockSpec((tn, K), lambda i, j: (j, 0)),
                  pl.BlockSpec((tm, tn), lambda i, j: (i, j))],
        out_specs=pl.BlockSpec((tm, tn), lambda i, j: (i, j)),
        out_shape=jax.ShapeDtypeStruct((T, N), out_dtype),
        compiler_params=pltpu.CompilerParams(
            dimension_semantics=("parallel", "parallel"),
            vmem_limit_bytes=_VMEM_LIMIT),
    )(x, w, residual)


def flash_attention(q, k, v, cos, sin, scale):
    # q: (nkv, group, Tp, D); k/v: (nkv, Tp, D); cos/sin: (Tp, D) f32 rope tables.
    nkv, group, T, D = q.shape
    tq = _pick(T, [512, 256, 128, 64, 8])
    tkv = _pick(T, [512, 256, 128, 64, 8])

    def kv_block(qi, ki):
        # Never fetch K/V blocks that lie entirely above the causal diagonal:
        # clamp to the last needed block (same index as previous step -> no DMA).
        return jnp.minimum(ki, (qi * tq + tq - 1) // tkv)

    return pl.pallas_call(
        functools.partial(_flash_kernel, scale=scale, tq=tq, tkv=tkv,
                          group=group, hd=D),
        grid=(nkv, T // tq, T // tkv),
        in_specs=[
            pl.BlockSpec((1, group, tq, D), lambda h, i, j: (h, 0, i, 0)),
            pl.BlockSpec((1, tkv, D), lambda h, i, j: (h, kv_block(i, j), 0)),
            pl.BlockSpec((1, tkv, D), lambda h, i, j: (h, kv_block(i, j), 0)),
            pl.BlockSpec((tq, D), lambda h, i, j: (i, 0)),
            pl.BlockSpec((tq, D), lambda h, i, j: (i, 0)),
            pl.BlockSpec((tkv, D), lambda h, i, j: (kv_block(i, j), 0)),
            pl.BlockSpec((tkv, D), lambda h, i, j: (kv_block(i, j), 0)),
        ],
        out_specs=pl.BlockSpec((1, group, tq, D), lambda h, i, j: (h, 0, i, 0)),
        out_shape=jax.ShapeDtypeStruct((nkv, group, T, D), q.dtype),
        scratch_shapes=[pltpu.VMEM((group, tq, 1), jnp.float32),
                        pltpu.VMEM((group, tq, 1), jnp.float32),
                        pltpu.VMEM((group, tq, D), jnp.float32)],
        compiler_params=pltpu.CompilerParams(
            dimension_semantics=("parallel", "parallel", "arbitrary"),
            vmem_limit_bytes=_VMEM_LIMIT),
    )(q, k, v, cos, sin, cos, sin)


def moe_experts(x, w1, w3, w2, topi, topw, top_k):
    """Megablocks-style MoE.  x: (Tp, H) ffn-normed bf16; w*: (E, F, H).
    Tokens are sorted/grouped by expert, each group padded to the token tile; the
    kernel only streams one expert's weights per tile (top_k/E of dense traffic)."""
    E, F, H = w1.shape
    Tp = x.shape[0]
    n_assign = Tp * top_k

    tm = min(512, n_assign)                          # Tp is a multiple of 256
    tf_pref = 1024 if _VMEM_LIMIT >= (96 << 20) else 256
    tf = _pick(F, [tf_pref, 512, 256, 128, 64])
    nf = F // tf
    num_tiles = -(-n_assign // tm) + E               # static worst-case tile count
    R = num_tiles * tm

    # --------- routing / grouping (XLA, analogous to ops.padded_gather) ---------
    flat_e = topi.reshape(-1).astype(jnp.int32)                  # (n_assign,)
    flat_w = topw.reshape(-1).astype(jnp.float32)
    order = jnp.argsort(flat_e)
    sorted_e = flat_e[order]
    sorted_tok = (order // top_k).astype(jnp.int32)
    sorted_w = flat_w[order]

    counts = jnp.bincount(flat_e, length=E).astype(jnp.int32)    # (E,)
    padded = ((counts + tm - 1) // tm) * tm
    cum_counts = jnp.cumsum(counts)
    cum_padded = jnp.cumsum(padded)
    count_off = cum_counts - counts
    padded_off = cum_padded - padded
    within = jnp.arange(n_assign, dtype=jnp.int32) - count_off[sorted_e]
    dest = (padded_off[sorted_e] + within).astype(jnp.int32)     # row in grouped buf

    src = jnp.full((R,), Tp, dtype=jnp.int32).at[dest].set(sorted_tok)
    x_pad = jnp.concatenate([x, jnp.zeros((1, H), x.dtype)], axis=0)
    xg = x_pad[src]                                              # (R, H), zero pads

    tile_start = jnp.arange(num_tiles, dtype=jnp.int32) * tm
    tg = jnp.minimum(jnp.searchsorted(cum_padded, tile_start, side="right"),
                     E - 1).astype(jnp.int32)
    total_padded = cum_padded[-1]
    num_valid = (total_padded // tm).astype(jnp.int32)
    last_group = tg[jnp.maximum(num_valid - 1, 0)]
    tile_group = jnp.where(tile_start < total_padded, tg, last_group).astype(jnp.int32)
    nvalid_arr = jnp.reshape(num_valid, (1,))

    # ------------------------------- kernel call --------------------------------
    def w_map(t, f, grp, nv):
        # Slack tiles repeat the previous weight block index -> no extra DMA.
        return (grp[t], jnp.where(t < nv[0], f, nf - 1), 0)

    grid_spec = pltpu.PrefetchScalarGridSpec(
        num_scalar_prefetch=2,
        grid=(num_tiles, nf),
        in_specs=[
            pl.BlockSpec((tm, H), lambda t, f, grp, nv: (jnp.minimum(t, nv[0] - 1), 0)),
            pl.BlockSpec((1, tf, H), w_map),
            pl.BlockSpec((1, tf, H), w_map),
            pl.BlockSpec((1, tf, H), w_map),
        ],
        out_specs=pl.BlockSpec((tm, H), lambda t, f, grp, nv: (t, 0)),
        scratch_shapes=[pltpu.VMEM((tm, H), jnp.float32)],
    )
    yg = pl.pallas_call(
        _moe_group_kernel,
        grid_spec=grid_spec,
        out_shape=jax.ShapeDtypeStruct((R, H), x.dtype),
        compiler_params=pltpu.CompilerParams(
            dimension_semantics=("parallel", "arbitrary"),
            vmem_limit_bytes=_VMEM_LIMIT),
    )(tile_group, nvalid_arr, xg, w1, w3, w2)

    # --------- weighted scatter back (analogous to ops.padded_scatter) ----------
    contrib = sorted_w[:, None] * yg[dest].astype(jnp.float32)   # (n_assign, H)
    return jnp.zeros((Tp, H), jnp.float32).at[sorted_tok].add(contrib)


# --------------------------- model glue (plain JAX) ----------------------------


def decoder_layer(x, cos, sin, p, cfg):
    Tp = x.shape[0]
    nh, nkv, hd = cfg["num_heads"], cfg["num_kv_heads"], cfg["head_dim"]
    group = nh // nkv
    E, K = cfg["num_experts"], cfg["top_k"]
    q_size, kv_size = nh * hd, nkv * hd

    # --- attention block (RMSNorm fused into QKV projection; RoPE fused in flash) ---
    qkv = rmsnorm_matmul(x, p["attention_norm"], p["wqkv"], cfg["rms_eps"])
    # TODO(synk): these layout transposes still run in XLA; a lane-slab q layout
    #             would remove them but breaks the (8,128) rule at small head_dim.
    q = qkv[:, :q_size].reshape(Tp, nkv, group, hd).transpose(1, 2, 0, 3)
    k = qkv[:, q_size:q_size + kv_size].reshape(Tp, nkv, hd).transpose(1, 0, 2)
    v = qkv[:, q_size + kv_size:].reshape(Tp, nkv, hd).transpose(1, 0, 2)
    attn = flash_attention(q, k, v, cos, sin, hd ** -0.5)        # (nkv, group, Tp, hd)
    attn = attn.transpose(2, 0, 1, 3).reshape(Tp, nh * hd)
    h = matmul_nt_residual(attn, p["wo"], x)                     # h = x + attn @ wo^T

    # --- MoE block ---
    ffn_in, gate_logits = rmsnorm_gate(h, p["ffn_norm"], p["gate"], cfg["rms_eps"])
    probs = jax.nn.softmax(gate_logits[:, :E], axis=-1)          # f32
    topw, topi = jax.lax.top_k(probs, K)
    topw = topw / jnp.sum(topw, axis=-1, keepdims=True)
    moe = moe_experts(ffn_in, p["w1"], p["w3"], p["w2"], topi, topw, K)
    return (h.astype(jnp.float32) + moe).astype(x.dtype)


def mixtral_forward(input_ids, positions, params, cfg):
    T = input_ids.shape[0]
    Tp = _round_up(T, _SEQ_TILE)
    ids = jnp.pad(input_ids, (0, Tp - T))
    pos = jnp.pad(positions, (0, Tp - T))
    hd = cfg["head_dim"]

    # Half-rotation RoPE tables (cos duplicated over halves, sin sign-folded).
    # Valid because Wq/Wk rows were pre-permuted from interleaved to split order.
    inv = 1.0 / (cfg["rope_theta"] ** (jnp.arange(0, hd, 2, dtype=jnp.float32) / hd))
    ang = pos.astype(jnp.float32)[:, None] * inv[None, :]        # (Tp, hd/2)
    cos = jnp.concatenate([jnp.cos(ang), jnp.cos(ang)], axis=-1)
    sin = jnp.concatenate([-jnp.sin(ang), jnp.sin(ang)], axis=-1)

    hidden = jnp.take(params["tok_embeddings"], ids, axis=0)     # (Tp, H) bf16
    for lp in params["layers"]:
        hidden = decoder_layer(hidden, cos, sin, lp, cfg)
    out = rmsnorm(hidden, params["norm"], cfg["rms_eps"])
    return out[:T]


def init_params(key, cfg):
    H, F, E = cfg["hidden"], cfg["ffn"], cfg["num_experts"]
    nh, nkv, hd = cfg["num_heads"], cfg["num_kv_heads"], cfg["head_dim"]
    V, L = cfg["vocab"], cfg["num_layers"]
    E_pad = max(128, _round_up(E, 128))   # lane-dense gate projection output

    def nrm(k, shape):
        return (0.02 * jax.random.normal(k, shape, jnp.float32)).astype(jnp.bfloat16)

    # Interleaved->split head-dim permutation (checkpoint-conversion step): makes
    # gptj-style RoPE a half-rotation; q.k^T is invariant under it.
    perm = jnp.concatenate([jnp.arange(0, hd, 2), jnp.arange(1, hd, 2)])

    keys = jax.random.split(key, 1 + L)
    params = {"tok_embeddings": nrm(keys[0], (V, H)),
              "norm": jnp.ones((H,), jnp.bfloat16),
              "layers": []}
    for i in range(L):
        k = jax.random.split(keys[1 + i], 6)
        wqkv = nrm(k[0], ((nh + 2 * nkv) * hd, H))               # (N, K) layout
        wq = wqkv[:nh * hd].reshape(nh, hd, H)[:, perm].reshape(nh * hd, H)
        wk = wqkv[nh * hd:(nh + nkv) * hd].reshape(nkv, hd, H)[:, perm].reshape(nkv * hd, H)
        wv = wqkv[(nh + nkv) * hd:]
        gate = jnp.zeros((E_pad, H), jnp.bfloat16).at[:E].set(nrm(k[2], (E, H)))
        params["layers"].append({
            "attention_norm": jnp.ones((H,), jnp.bfloat16),
            "ffn_norm": jnp.ones((H,), jnp.bfloat16),
            "wqkv": jnp.concatenate([wq, wk, wv], axis=0),
            "wo": nrm(k[1], (H, nh * hd)),                       # (N, K) layout
            "gate": gate,                                        # (E_pad, H)
            # w1/w3/w2 stored (E, F, H): matches the module's (E*F, H) params,
            # i.e. out = silu(x W1_e^T) * (x W3_e^T) @ W2_e with W2_e of shape (F, H).
            "w1": nrm(k[3], (E, F, H)),
            "w3": nrm(k[4], (E, F, H)),
            "w2": nrm(k[5], (E, F, H)),
        })
    return params


if __name__ == "__main__":
    cfg = dict(
        hidden=256,
        num_heads=2,
        num_kv_heads=1,       # GQA group = 2
        head_dim=128,         # hidden // num_heads
        ffn=512,
        num_experts=4,
        top_k=2,
        num_layers=2,
        vocab=512,
        rope_theta=10000.0,
        rms_eps=1e-5,
    )
    T = 8
    key = jax.random.PRNGKey(0)
    pkey, ikey = jax.random.split(key)
    params = init_params(pkey, cfg)
    input_ids = jax.random.randint(ikey, (T,), 0, cfg["vocab"], dtype=jnp.int32)
    positions = jnp.arange(T, dtype=jnp.int32)

    out = mixtral_forward(input_ids, positions, params, cfg)
    out = jax.block_until_ready(out)
    assert out.shape == (T, cfg["hidden"])
    assert bool(jnp.all(jnp.isfinite(out.astype(jnp.float32))))
    print("KERNEL_OK")
</pallas_src>

<mosaic_0001>
module attributes {stable_mosaic.version = 11 : i64} {
  func.func @_rms_matmul_kernel(%arg0: i32, %arg1: i32, %arg2: memref<256x256xbf16, #tpu.memory_space<vmem>>, %arg3: memref<1x256xbf16, #tpu.memory_space<vmem>>, %arg4: memref<512x256xbf16, #tpu.memory_space<vmem>>, %arg5: memref<256x512xbf16, #tpu.memory_space<vmem>>, %arg6: memref<256x256xbf16, #tpu.memory_space<vmem>>) attributes {dimension_semantics = [#tpu.dimension_semantics<parallel>, #tpu.dimension_semantics<arbitrary>], iteration_bounds = array<i64: 1, 1>, scalar_prefetch = 0 : i64, scratch_operands = 1 : i64, tpu.core_type = #tpu.core_type<tc>, window_params = [{transform_indices = @transform_0, window_bounds = array<i64: 256, 256>}, {pipeline_mode = #tpu.pipeline_mode<synchronous>, transform_indices = @transform_1, window_bounds = array<i64: 1, 256>}, {transform_indices = @transform_2, window_bounds = array<i64: 512, 256>}, {transform_indices = @transform_3, window_bounds = array<i64: 256, 512>}]} {
    %c0_i32 = arith.constant 0 : i32
    %0 = arith.cmpi eq, %arg1, %c0_i32 : i32
    %1 = arith.extui %0 : i1 to i32
    %c0_i32_0 = arith.constant 0 : i32
    %2 = arith.cmpi ne, %1, %c0_i32_0 : i32
    scf.if %2 {
      %c0_6 = arith.constant 0 : index
      %c0_7 = arith.constant 0 : index
      %8 = vector.load %arg2[%c0_6, %c0_7] : memref<256x256xbf16, #tpu.memory_space<vmem>>, vector<256x256xbf16>
      %9 = arith.extf %8 : vector<256x256xbf16> to vector<256x256xf32>
      %10 = arith.mulf %9, %9 : vector<256x256xf32>
      %cst_8 = arith.constant dense<0.000000e+00> : vector<256xf32>
      %11 = vector.multi_reduction <add>, %10, %cst_8 [1] : vector<256x256xf32> to vector<256xf32>
      %12 = vector.shape_cast %11 : vector<256xf32> to vector<256x1xf32>
      %cst_9 = arith.constant 2.560000e+02 : f32
      %13 = vector.broadcast %cst_9 : f32 to vector<256x1xf32>
      %14 = arith.divf %12, %13 : vector<256x1xf32>
      %cst_10 = arith.constant 9.99999974E-6 : f32
      %15 = vector.broadcast %cst_10 : f32 to vector<256x1xf32>
      %16 = arith.addf %14, %15 : vector<256x1xf32>
      %17 = math.rsqrt %16 : vector<256x1xf32>
      %18 = vector.broadcast %17 : vector<256x1xf32> to vector<256x256xf32>
      %19 = arith.mulf %9, %18 : vector<256x256xf32>
      %c0_11 = arith.constant 0 : index
      %c0_12 = arith.constant 0 : index
      %20 = vector.load %arg3[%c0_11, %c0_12] : memref<1x256xbf16, #tpu.memory_space<vmem>>, vector<1x256xbf16>
      %21 = arith.extf %20 : vector<1x256xbf16> to vector<1x256xf32>
      %22 = vector.broadcast %21 : vector<1x256xf32> to vector<256x256xf32>
      %23 = arith.mulf %19, %22 : vector<256x256xf32>
      %24 = arith.truncf %23 : vector<256x256xf32> to vector<256x256xbf16>
      %c0_13 = arith.constant 0 : index
      %c0_14 = arith.constant 0 : index
      %25 = vector.load %arg6[%c0_13, %c0_14] : memref<256x256xbf16, #tpu.memory_space<vmem>>, vector<256x256xbf16>
      tpu.vector_store %arg6[%c0_13, %c0_14], %24 {strides = array<i32>} : memref<256x256xbf16, #tpu.memory_space<vmem>>, vector<256x256xbf16>,
    } else {
    }
    %c0 = arith.constant 0 : index
    %c0_1 = arith.constant 0 : index
    %3 = vector.load %arg6[%c0, %c0_1] : memref<256x256xbf16, #tpu.memory_space<vmem>>, vector<256x256xbf16>
    %c0_2 = arith.constant 0 : index
    %c0_3 = arith.constant 0 : index
    %4 = vector.load %arg4[%c0_2, %c0_3] : memref<512x256xbf16, #tpu.memory_space<vmem>>, vector<512x256xbf16>
    %cst = arith.constant dense<0.000000e+00> : vector<256x512xf32>
    %5 = tpu.matmul %3, %4, %cst {dimension_numbers = #tpu.dot_dimension_numbers<[1], [1], [0], [0], [0, 0, 1, 0], [], []>} : vector<256x256xbf16>, vector<512x256xbf16>, vector<256x512xf32> -> vector<256x512xf32>
    %6 = arith.truncf %5 : vector<256x512xf32> to vector<256x512xbf16>
    %c0_4 = arith.constant 0 : index
    %c0_5 = arith.constant 0 : index
    %7 = vector.load %arg5[%c0_4, %c0_5] : memref<256x512xbf16, #tpu.memory_space<vmem>>, vector<256x512xbf16>
    tpu.vector_store %arg5[%c0_4, %c0_5], %6 {strides = array<i32>} : memref<256x512xbf16, #tpu.memory_space<vmem>>, vector<256x512xbf16>,
    return
  }
  func.func @transform_0(%arg0: i32, %arg1: i32) -> (i32, i32) {
    %c0_i32 = arith.constant 0 : i32
    %c0_i32_0 = arith.constant 0 : i32
    return %arg0, %c0_i32 : i32, i32
  }
  func.func @transform_1(%arg0: i32, %arg1: i32) -> (i32, i32) {
    %c0_i32 = arith.constant 0 : i32
    %c0_i32_0 = arith.constant 0 : i32
    %c0_i32_1 = arith.constant 0 : i32
    return %c0_i32, %c0_i32_0 : i32, i32
  }
  func.func @transform_2(%arg0: i32, %arg1: i32) -> (i32, i32) {
    %c0_i32 = arith.constant 0 : i32
    %c0_i32_0 = arith.constant 0 : i32
    return %arg1, %c0_i32 : i32, i32
  }
  func.func @transform_3(%arg0: i32, %arg1: i32) -> (i32, i32) {
    %c0_i32 = arith.constant 0 : i32
    return %arg0, %arg1 : i32, i32
  }
}

</mosaic_0001>

<llo_original>
// kernel: tpu_custom_call.1
$region0: #{tpu_custom_call.1}
  #allocation0 [shape = 'u32[]', space=smem, size = 0x4, offset = 0x4, fixed_abs, tag = 'smem constant byte address 0x4 - core index']
  #allocation1 [shape = 'u32[144,128]{1,0:T(1,128)}', space=vmem, size = 0x12000, scoped, tag = 'internal scratch']
  #allocation2 [shape = 'bf16[256,256]{1,0:T(16,128)(2,1)}', space=vmem, size = 0x20000, scoped, tag = 'scratch operand']
  %s0 = inlined_call_operand.hbm [shape: bf16[256,256], index: 0, kind: input, shape index: {}]
  %s1 = inlined_call_operand.hbm [shape: bf16[1,256], index: 1, kind: input, shape index: {}]
  %s2 = inlined_call_operand.hbm [shape: bf16[512,256], index: 2, kind: input, shape index: {}]
  %s3 = inlined_call_operand.hbm [shape: bf16[256,512], index: 3, kind: output, shape index: {}]
  %s4 = sld [smem:[#allocation0]]
  $region38: #{tpu_custom_call.1} parent=0
    _
  %s6 = ssub.s32 1, %s4
  %s7 = scalar_select 0, %s6, %s4
  $region1: #{tpu_custom_call.1} parent=0
    #allocation3 [shape = 'u8[131072]{0}', space=vmem, size = 0x20000, scoped, tag = 'input window, operand 0, single buffered']
    #allocation4 [shape = 's32[1]{0}', space=sflag, size = 0x4, scoped, tag = 'scoped memory for tpu_custom_call.1']
    #allocation5 [shape = 's32[1]{0}', space=sflag, size = 0x4, scoped, tag = 'scoped memory for tpu_custom_call.1']
    #allocation6 [shape = 'u8[1024]{0}', space=vmem, size = 0x400, scoped, tag = 'input window, operand 1, single buffered']
    #allocation7 [shape = 's32[1]{0}', space=sflag, size = 0x4, scoped, tag = 'scoped memory for tpu_custom_call.1']
    #allocation8 [shape = 'u8[262144]{0}', space=vmem, size = 0x40000, scoped, tag = 'input window, operand 2, single buffered']
    #allocation9 [shape = 'u8[262144]{0}', space=vmem, size = 0x40000, scoped, tag = 'output window, operand 0, single buffered']
    %8 = vsyncpa [#allocation4], 0
    %9 = vsyncpa [#allocation7], 0
    %10 = vsyncpa [#allocation5], 0
    // Predicated region
    $region2: #{tpu_custom_call.1} parent=1 // pred_check
      _
    $region3: #{tpu_custom_call.1} parent=1 // pred_check_branch
      %12 = sbr.rel (0) target = $region5
    $region4: #{tpu_custom_call.1} parent=1 // pred_region
      %s14 = ssub.s32 4096, 4096
      %15 = vsyncadd [#allocation4], %s14
      %s16 = sshll.u32 [#allocation3], 4
      %s17 = int_to_ptr.vmem [resolvable:$true] %s16
      %22 = dma.hbm_to_vmem [thread:$0]  %s0, 4096, %s17, [#allocation4], 128, 128, 8
    $region5: #{tpu_custom_call.1} parent=1 // pred_fallthru
      _
    // Predicated region
    $region6: #{tpu_custom_call.1} parent=1 // pred_check
      _
    $region7: #{tpu_custom_call.1} parent=1 // pred_check_branch
      %24 = sbr.rel (0) target = $region9
    $region8: #{tpu_custom_call.1} parent=1 // pred_region
      %s26 = ssub.s32 32, 32
      %27 = vsyncadd [#allocation7], %s26
      %s29 = sshll.u32 [#allocation6], 4
      %s30 = int_to_ptr.vmem [resolvable:$true] %s29
      %32 = dma.hbm_to_vmem [thread:$0]  %s1, 32, %s30, [#allocation7]
    $region9: #{tpu_custom_call.1} parent=1 // pred_fallthru
      _
    // Predicated region
    $region10: #{tpu_custom_call.1} parent=1 // pred_check
      _
    $region11: #{tpu_custom_call.1} parent=1 // pred_check_branch
      %34 = sbr.rel (0) target = $region13
    $region12: #{tpu_custom_call.1} parent=1 // pred_region
      %s36 = ssub.s32 8192, 8192
      %37 = vsyncadd [#allocation7], %s36
      %s38 = sshll.u32 [#allocation8], 4
      %s39 = int_to_ptr.vmem [resolvable:$true] %s38
      %44 = dma.hbm_to_vmem [thread:$0]  %s2, 8192, %s39, [#allocation7], 128, 128, 8
    $region13: #{tpu_custom_call.1} parent=1 // pred_fallthru
      _
    // Predicated region
    $region14: #{tpu_custom_call.1} parent=1 // pred_check
      _
    $region15: #{tpu_custom_call.1} parent=1 // pred_check_branch
      %46 = sbr.rel (0) target = $region17
    $region16: #{tpu_custom_call.1} parent=1 // pred_region
      %47 = dma.done [#allocation4], 4096
    $region17: #{tpu_custom_call.1} parent=1 // pred_fallthru
      _
    // Predicated region
    $region18: #{tpu_custom_call.1} parent=1 // pred_check
      _
    $region19: #{tpu_custom_call.1} parent=1 // pred_check_branch
      %49 = sbr.rel (0) target = $region21
    $region20: #{tpu_custom_call.1} parent=1 // pred_region
      %50 = dma.done [#allocation7], 32
    $region21: #{tpu_custom_call.1} parent=1 // pred_fallthru
      _
    // Predicated region
    $region22: #{tpu_custom_call.1} parent=1 // pred_check
      _
    $region23: #{tpu_custom_call.1} parent=1 // pred_check_branch
      %52 = sbr.rel (0) target = $region25
    $region24: #{tpu_custom_call.1} parent=1 // pred_region
      %53 = dma.done [#allocation7], 8192
    $region25: #{tpu_custom_call.1} parent=1 // pred_fallthru
      _
    %p54 = scmp.eq.s32.totalorder 0, 0
    // Predicated region
    $region26: #{tpu_custom_call.1} parent=1 // pred_check
      %p55 = pneg %p54
    $region27: #{tpu_custom_call.1} parent=1 // pred_check_branch
      %57 = sbr.rel (%p55) target = $region29
    $region28: #{tpu_custom_call.1} parent=1 // pred_region
      %v58 = vld [vmem:[#allocation3] sm:$0xff]
      %v59 = vld [vmem:[#allocation3 + $0x8] sm:$0xff]
      %v60 = vld [vmem:[#allocation3 + $0x10] sm:$0xff]
      %v61 = vld [vmem:[#allocation3 + $0x18] sm:$0xff]
      %v62 = vld [vmem:[#allocation3 + $0x20] sm:$0xff]
      %v63 = vld [vmem:[#allocation3 + $0x28] sm:$0xff]
      %v64 = vld [vmem:[#allocation3 + $0x30] sm:$0xff]
      %v65 = vld [vmem:[#allocation3 + $0x38] sm:$0xff]
      %v66 = vld [vmem:[#allocation3 + $0x40] sm:$0xff]
      %v67 = vld [vmem:[#allocation3 + $0x48] sm:$0xff]
      %v68 = vld [vmem:[#allocation3 + $0x50] sm:$0xff]
      %v69 = vld [vmem:[#allocation3 + $0x58] sm:$0xff]
      %v70 = vld [vmem:[#allocation3 + $0x60] sm:$0xff]
      %v71 = vld [vmem:[#allocation3 + $0x68] sm:$0xff]
      %v72 = vld [vmem:[#allocation3 + $0x70] sm:$0xff]
      %v73 = vld [vmem:[#allocation3 + $0x78] sm:$0xff]
      %v74 = vld [vmem:[#allocation3 + $0x80] sm:$0xff]
      %v75 = vld [vmem:[#allocation3 + $0x88] sm:$0xff]
      %v76 = vld [vmem:[#allocation3 + $0x90] sm:$0xff]
      %v77 = vld [vmem:[#allocation3 + $0x98] sm:$0xff]
      %v78 = vld [vmem:[#allocation3 + $0xa0] sm:$0xff]
      %v79 = vld [vmem:[#allocation3 + $0xa8] sm:$0xff]
      %v80 = vld [vmem:[#allocation3 + $0xb0] sm:$0xff]
      %v81 = vld [vmem:[#allocation3 + $0xb8] sm:$0xff]
      %v82 = vld [vmem:[#allocation3 + $0xc0] sm:$0xff]
      %v83 = vld [vmem:[#allocation3 + $0xc8] sm:$0xff]
      %v84 = vld [vmem:[#allocation3 + $0xd0] sm:$0xff]
      %v85 = vld [vmem:[#allocation3 + $0xd8] sm:$0xff]
      %v86 = vld [vmem:[#allocation3 + $0xe0] sm:$0xff]
      %v87 = vld [vmem:[#allocation3 + $0xe8] sm:$0xff]
      %v88 = vld [vmem:[#allocation3 + $0xf0] sm:$0xff]
      %v89 = vld [vmem:[#allocation3 + $0xf8] sm:$0xff]
      %v90 = vunpack.c.l.bf16 %v58
      %v91 = vunpack.c.h.bf16 %v58
      %v92 = vunpack.c.l.bf16 %v59
      %v93 = vunpack.c.h.bf16 %v59
      %v94 = vunpack.c.l.bf16 %v60
      %v95 = vunpack.c.h.bf16 %v60
      %v96 = vunpack.c.l.bf16 %v61
      %v97 = vunpack.c.h.bf16 %v61
      %v98 = vunpack.c.l.bf16 %v62
      %v99 = vunpack.c.h.bf16 %v62
      %v100 = vunpack.c.l.bf16 %v63
      %v101 = vunpack.c.h.bf16 %v63
      %v102 = vunpack.c.l.bf16 %v64
      %v103 = vunpack.c.h.bf16 %v64
      %v104 = vunpack.c.l.bf16 %v65
      %v105 = vunpack.c.h.bf16 %v65
      %v106 = vunpack.c.l.bf16 %v66
      %v107 = vunpack.c.h.bf16 %v66
      %v108 = vunpack.c.l.bf16 %v67
      %v109 = vunpack.c.h.bf16 %v67
      %v110 = vunpack.c.l.bf16 %v68
      %v111 = vunpack.c.h.bf16 %v68
      %v112 = vunpack.c.l.bf16 %v69
      %v113 = vunpack.c.h.bf16 %v69
      %v114 = vunpack.c.l.bf16 %v70
      %v115 = vunpack.c.h.bf16 %v70
      %v116 = vunpack.c.l.bf16 %v71
      %v117 = vunpack.c.h.bf16 %v71
      %v118 = vunpack.c.l.bf16 %v72
      %v119 = vunpack.c.h.bf16 %v72
      %v120 = vunpack.c.l.bf16 %v73
      %v121 = vunpack.c.h.bf16 %v73
      %v122 = vunpack.c.l.bf16 %v74
      %v123 = vunpack.c.h.bf16 %v74
      %v124 = vunpack.c.l.bf16 %v75
      %v125 = vunpack.c.h.bf16 %v75
      %v126 = vunpack.c.l.bf16 %v76
      %v127 = vunpack.c.h.bf16 %v76
      %v128 = vunpack.c.l.bf16 %v77
      %v129 = vunpack.c.h.bf16 %v77
      %v130 = vunpack.c.l.bf16 %v78
      %v131 = vunpack.c.h.bf16 %v78
      %v132 = vunpack.c.l.bf16 %v79
      %v133 = vunpack.c.h.bf16 %v79
      %v134 = vunpack.c.l.bf16 %v80
      %v135 = vunpack.c.h.bf16 %v80
      %v136 = vunpack.c.l.bf16 %v81
      %v137 = vunpack.c.h.bf16 %v81
      %v138 = vunpack.c.l.bf16 %v82
      %v139 = vunpack.c.h.bf16 %v82
      %v140 = vunpack.c.l.bf16 %v83
      %v141 = vunpack.c.h.bf16 %v83
      %v142 = vunpack.c.l.bf16 %v84
      %v143 = vunpack.c.h.bf16 %v84
      %v144 = vunpack.c.l.bf16 %v85
      %v145 = vunpack.c.h.bf16 %v85
      %v146 = vunpack.c.l.bf16 %v86
      %v147 = vunpack.c.h.bf16 %v86
      %v148 = vunpack.c.l.bf16 %v87
      %v149 = vunpack.c.h.bf16 %v87
      %v150 = vunpack.c.l.bf16 %v88
      %v151 = vunpack.c.h.bf16 %v88
      %v152 = vunpack.c.l.bf16 %v89
      %v153 = vunpack.c.h.bf16 %v89
      %v154 = vmul.f32 %v90, %v90
      %v155 = vmul.f32 %v91, %v91
      %v156 = vmul.f32 %v92, %v92
      %v157 = vmul.f32 %v93, %v93
      %v158 = vmul.f32 %v94, %v94
      %v159 = vmul.f32 %v95, %v95
      %v160 = vmul.f32 %v96, %v96
      %v161 = vmul.f32 %v97, %v97
      %v162 = vmul.f32 %v98, %v98
      %v163 = vmul.f32 %v99, %v99
      %v164 = vmul.f32 %v100, %v100
      %v165 = vmul.f32 %v101, %v101
      %v166 = vmul.f32 %v102, %v102
      %v167 = vmul.f32 %v103, %v103
      %v168 = vmul.f32 %v104, %v104
      %v169 = vmul.f32 %v105, %v105
      %v170 = vmul.f32 %v106, %v106
      %v171 = vmul.f32 %v107, %v107
      %v172 = vmul.f32 %v108, %v108
      %v173 = vmul.f32 %v109, %v109
      %v174 = vmul.f32 %v110, %v110
      %v175 = vmul.f32 %v111, %v111
      %v176 = vmul.f32 %v112, %v112
      %v177 = vmul.f32 %v113, %v113
      %v178 = vmul.f32 %v114, %v114
      %v179 = vmul.f32 %v115, %v115
      %v180 = vmul.f32 %v116, %v116
      %v181 = vmul.f32 %v117, %v117
      %v182 = vmul.f32 %v118, %v118
      %v183 = vmul.f32 %v119, %v119
      %v184 = vmul.f32 %v120, %v120
      %v185 = vmul.f32 %v121, %v121
      %v186 = vmul.f32 %v122, %v122
      %v187 = vmul.f32 %v123, %v123
      %v188 = vmul.f32 %v124, %v124
      %v189 = vmul.f32 %v125, %v125
      %v190 = vmul.f32 %v126, %v126
      %v191 = vmul.f32 %v127, %v127
      %v192 = vmul.f32 %v128, %v128
      %v193 = vmul.f32 %v129, %v129
      %v194 = vmul.f32 %v130, %v130
      %v195 = vmul.f32 %v131, %v131
      %v196 = vmul.f32 %v132, %v132
      %v197 = vmul.f32 %v133, %v133
      %v198 = vmul.f32 %v134, %v134
      %v199 = vmul.f32 %v135, %v135
      %v200 = vmul.f32 %v136, %v136
      %v201 = vmul.f32 %v137, %v137
      %v202 = vmul.f32 %v138, %v138
      %v203 = vmul.f32 %v139, %v139
      %v204 = vmul.f32 %v140, %v140
      %v205 = vmul.f32 %v141, %v141
      %v206 = vmul.f32 %v142, %v142
      %v207 = vmul.f32 %v143, %v143
      %v208 = vmul.f32 %v144, %v144
      %v209 = vmul.f32 %v145, %v145
      %v210 = vmul.f32 %v146, %v146
      %v211 = vmul.f32 %v147, %v147
      %v212 = vmul.f32 %v148, %v148
      %v213 = vmul.f32 %v149, %v149
      %v214 = vmul.f32 %v150, %v150
      %v215 = vmul.f32 %v151, %v151
      %v216 = vmul.f32 %v152, %v152
      %v217 = vmul.f32 %v153, %v153
      %v218 = vadd.f32 %v154, %v155
      %219 = vadd.xlane.f32.xlu0 %v218
      %v220 = vpop.xlane.xlu0 %219
      %v221 = vadd.f32 %v156, %v157
      %222 = vadd.xlane.f32.xlu0 %v221
      %v223 = vpop.xlane.xlu0 %222
      %v224 = vadd.f32 %v158, %v159
      %225 = vadd.xlane.f32.xlu0 %v224
      %v226 = vpop.xlane.xlu0 %225
      %v227 = vadd.f32 %v160, %v161
      %228 = vadd.xlane.f32.xlu0 %v227
      %v229 = vpop.xlane.xlu0 %228
      %v230 = vadd.f32 %v162, %v163
      %231 = vadd.xlane.f32.xlu0 %v230
      %v232 = vpop.xlane.xlu0 %231
      %v233 = vadd.f32 %v164, %v165
      %234 = vadd.xlane.f32.xlu0 %v233
      %v235 = vpop.xlane.xlu0 %234
      %v236 = vadd.f32 %v166, %v167
      %237 = vadd.xlane.f32.xlu0 %v236
      %v238 = vpop.xlane.xlu0 %237
      %v239 = vadd.f32 %v168, %v169
      %240 = vadd.xlane.f32.xlu0 %v239
      %v241 = vpop.xlane.xlu0 %240
      %v242 = vadd.f32 %v170, %v171
      %243 = vadd.xlane.f32.xlu0 %v242
      %v244 = vpop.xlane.xlu0 %243
      %v245 = vadd.f32 %v172, %v173
      %246 = vadd.xlane.f32.xlu0 %v245
      %v247 = vpop.xlane.xlu0 %246
      %v248 = vadd.f32 %v174, %v175
      %249 = vadd.xlane.f32.xlu0 %v248
      %v250 = vpop.xlane.xlu0 %249
      %v251 = vadd.f32 %v176, %v177
      %252 = vadd.xlane.f32.xlu0 %v251
      %v253 = vpop.xlane.xlu0 %252
      %v254 = vadd.f32 %v178, %v179
      %255 = vadd.xlane.f32.xlu0 %v254
      %v256 = vpop.xlane.xlu0 %255
      %v257 = vadd.f32 %v180, %v181
      %258 = vadd.xlane.f32.xlu0 %v257
      %v259 = vpop.xlane.xlu0 %258
      %v260 = vadd.f32 %v182, %v183
      %261 = vadd.xlane.f32.xlu0 %v260
      %v262 = vpop.xlane.xlu0 %261
      %v263 = vadd.f32 %v184, %v185
      %264 = vadd.xlane.f32.xlu0 %v263
      %v265 = vpop.xlane.xlu0 %264
      %v266 = vadd.f32 %v186, %v187
      %267 = vadd.xlane.f32.xlu0 %v266
      %v268 = vpop.xlane.xlu0 %267
      %v269 = vadd.f32 %v188, %v189
      %270 = vadd.xlane.f32.xlu0 %v269
      %v271 = vpop.xlane.xlu0 %270
      %v272 = vadd.f32 %v190, %v191
      %273 = vadd.xlane.f32.xlu0 %v272
      %v274 = vpop.xlane.xlu0 %273
      %v275 = vadd.f32 %v192, %v193
      %276 = vadd.xlane.f32.xlu0 %v275
      %v277 = vpop.xlane.xlu0 %276
      %v278 = vadd.f32 %v194, %v195
      %279 = vadd.xlane.f32.xlu0 %v278
      %v280 = vpop.xlane.xlu0 %279
      %v281 = vadd.f32 %v196, %v197
      %282 = vadd.xlane.f32.xlu0 %v281
      %v283 = vpop.xlane.xlu0 %282
      %v284 = vadd.f32 %v198, %v199
      %285 = vadd.xlane.f32.xlu0 %v284
      %v286 = vpop.xlane.xlu0 %285
      %v287 = vadd.f32 %v200, %v201
      %288 = vadd.xlane.f32.xlu0 %v287
      %v289 = vpop.xlane.xlu0 %288
      %v290 = vadd.f32 %v202, %v203
      %291 = vadd.xlane.f32.xlu0 %v290
      %v292 = vpop.xlane.xlu0 %291
      %v293 = vadd.f32 %v204, %v205
      %294 = vadd.xlane.f32.xlu0 %v293
      %v295 = vpop.xlane.xlu0 %294
      %v296 = vadd.f32 %v206, %v207
      %297 = vadd.xlane.f32.xlu0 %v296
      %v298 = vpop.xlane.xlu0 %297
      %v299 = vadd.f32 %v208, %v209
      %300 = vadd.xlane.f32.xlu0 %v299
      %v301 = vpop.xlane.xlu0 %300
      %v302 = vadd.f32 %v210, %v211
      %303 = vadd.xlane.f32.xlu0 %v302
      %v304 = vpop.xlane.xlu0 %303
      %v305 = vadd.f32 %v212, %v213
      %306 = vadd.xlane.f32.xlu0 %v305
      %v307 = vpop.xlane.xlu0 %306
      %v308 = vadd.f32 %v214, %v215
      %309 = vadd.xlane.f32.xlu0 %v308
      %v310 = vpop.xlane.xlu0 %309
      %v311 = vadd.f32 %v216, %v217
      %312 = vadd.xlane.f32.xlu0 %v311
      %v313 = vpop.xlane.xlu0 %312
      %v314 = vrcp.pop 256.0
      %v315 = vmul.f32 %v220, %v314
      %v316 = vmul.f32 %v223, %v314
      %v317 = vmul.f32 %v226, %v314
      %v318 = vmul.f32 %v229, %v314
      %v319 = vmul.f32 %v232, %v314
      %v320 = vmul.f32 %v235, %v314
      %v321 = vmul.f32 %v238, %v314
      %v322 = vmul.f32 %v241, %v314
      %v323 = vmul.f32 %v244, %v314
      %v324 = vmul.f32 %v247, %v314
      %v325 = vmul.f32 %v250, %v314
      %v326 = vmul.f32 %v253, %v314
      %v327 = vmul.f32 %v256, %v314
      %v328 = vmul.f32 %v259, %v314
      %v329 = vmul.f32 %v262, %v314
      %v330 = vmul.f32 %v265, %v314
      %v331 = vmul.f32 %v268, %v314
      %v332 = vmul.f32 %v271, %v314
      %v333 = vmul.f32 %v274, %v314
      %v334 = vmul.f32 %v277, %v314
      %v335 = vmul.f32 %v280, %v314
      %v336 = vmul.f32 %v283, %v314
      %v337 = vmul.f32 %v286, %v314
      %v338 = vmul.f32 %v289, %v314
      %v339 = vmul.f32 %v292, %v314
      %v340 = vmul.f32 %v295, %v314
      %v341 = vmul.f32 %v298, %v314
      %v342 = vmul.f32 %v301, %v314
      %v343 = vmul.f32 %v304, %v314
      %v344 = vmul.f32 %v307, %v314
      %v345 = vmul.f32 %v310, %v314
      %v346 = vmul.f32 %v313, %v314
      %v347 = vadd.f32 %v315, 1e-05
      %v348 = vadd.f32 %v316, 1e-05
      %v349 = vadd.f32 %v317, 1e-05
      %v350 = vadd.f32 %v318, 1e-05
      %v351 = vadd.f32 %v319, 1e-05
      %v352 = vadd.f32 %v320, 1e-05
      %v353 = vadd.f32 %v321, 1e-05
      %v354 = vadd.f32 %v322, 1e-05
      %v355 = vadd.f32 %v323, 1e-05
      %v356 = vadd.f32 %v324, 1e-05
      %v357 = vadd.f32 %v325, 1e-05
      %v358 = vadd.f32 %v326, 1e-05
      %v359 = vadd.f32 %v327, 1e-05
      %v360 = vadd.f32 %v328, 1e-05
      %v361 = vadd.f32 %v329, 1e-05
      %v362 = vadd.f32 %v330, 1e-05
      %v363 = vadd.f32 %v331, 1e-05
      %v364 = vadd.f32 %v332, 1e-05
      %v365 = vadd.f32 %v333, 1e-05
      %v366 = vadd.f32 %v334, 1e-05
      %v367 = vadd.f32 %v335, 1e-05
      %v368 = vadd.f32 %v336, 1e-05
      %v369 = vadd.f32 %v337, 1e-05
      %v370 = vadd.f32 %v338, 1e-05
      %v371 = vadd.f32 %v339, 1e-05
      %v372 = vadd.f32 %v340, 1e-05
      %v373 = vadd.f32 %v341, 1e-05
      %v374 = vadd.f32 %v342, 1e-05
      %v375 = vadd.f32 %v343, 1e-05
      %v376 = vadd.f32 %v344, 1e-05
      %v377 = vadd.f32 %v345, 1e-05
      %v378 = vadd.f32 %v346, 1e-05
      %v379 = vrsqrt.pop %v347
      %v380 = vrsqrt.pop %v348
      %v381 = vrsqrt.pop %v349
      %v382 = vrsqrt.pop %v350
      %v383 = vrsqrt.pop %v351
      %v384 = vrsqrt.pop %v352
      %v385 = vrsqrt.pop %v353
      %v386 = vrsqrt.pop %v354
      %v387 = vrsqrt.pop %v355
      %v388 = vrsqrt.pop %v356
      %v389 = vrsqrt.pop %v357
      %v390 = vrsqrt.pop %v358
      %v391 = vrsqrt.pop %v359
      %v392 = vrsqrt.pop %v360
      %v393 = vrsqrt.pop %v361
      %v394 = vrsqrt.pop %v362
      %v395 = vrsqrt.pop %v363
      %v396 = vrsqrt.pop %v364
      %v397 = vrsqrt.pop %v365
      %v398 = vrsqrt.pop %v366
      %v399 = vrsqrt.pop %v367
      %v400 = vrsqrt.pop %v368
      %v401 = vrsqrt.pop %v369
      %v402 = vrsqrt.pop %v370
      %v403 = vrsqrt.pop %v371
      %v404 = vrsqrt.pop %v372
      %v405 = vrsqrt.pop %v373
      %v406 = vrsqrt.pop %v374
      %v407 = vrsqrt.pop %v375
      %v408 = vrsqrt.pop %v376
      %v409 = vrsqrt.pop %v377
      %v410 = vrsqrt.pop %v378
      %v411 = vmul.f32 %v90, %v379
      %v412 = vmul.f32 %v91, %v379
      %v413 = vmul.f32 %v92, %v380
      %v414 = vmul.f32 %v93, %v380
      %v415 = vmul.f32 %v94, %v381
      %v416 = vmul.f32 %v95, %v381
      %v417 = vmul.f32 %v96, %v382
      %v418 = vmul.f32 %v97, %v382
      %v419 = vmul.f32 %v98, %v383
      %v420 = vmul.f32 %v99, %v383
      %v421 = vmul.f32 %v100, %v384
      %v422 = vmul.f32 %v101, %v384
      %v423 = vmul.f32 %v102, %v385
      %v424 = vmul.f32 %v103, %v385
      %v425 = vmul.f32 %v104, %v386
      %v426 = vmul.f32 %v105, %v386
      %v427 = vmul.f32 %v106, %v387
      %v428 = vmul.f32 %v107, %v387
      %v429 = vmul.f32 %v108, %v388
      %v430 = vmul.f32 %v109, %v388
      %v431 = vmul.f32 %v110, %v389
      %v432 = vmul.f32 %v111, %v389
      %v433 = vmul.f32 %v112, %v390
      %v434 = vmul.f32 %v113, %v390
      %v435 = vmul.f32 %v114, %v391
      %v436 = vmul.f32 %v115, %v391
      %v437 = vmul.f32 %v116, %v392
      %v438 = vmul.f32 %v117, %v392
      %v439 = vmul.f32 %v118, %v393
      %v440 = vmul.f32 %v119, %v393
      %v441 = vmul.f32 %v120, %v394
      %v442 = vmul.f32 %v121, %v394
      %v443 = vmul.f32 %v122, %v395
      %v444 = vmul.f32 %v123, %v395
      %v445 = vmul.f32 %v124, %v396
      %v446 = vmul.f32 %v125, %v396
      %v447 = vmul.f32 %v126, %v397
      %v448 = vmul.f32 %v127, %v397
      %v449 = vmul.f32 %v128, %v398
      %v450 = vmul.f32 %v129, %v398
      %v451 = vmul.f32 %v130, %v399
      %v452 = vmul.f32 %v131, %v399
      %v453 = vmul.f32 %v132, %v400
      %v454 = vmul.f32 %v133, %v400
      %v455 = vmul.f32 %v134, %v401
      %v456 = vmul.f32 %v135, %v401
      %v457 = vmul.f32 %v136, %v402
      %v458 = vmul.f32 %v137, %v402
      %v459 = vmul.f32 %v138, %v403
      %v460 = vmul.f32 %v139, %v403
      %v461 = vmul.f32 %v140, %v404
      %v462 = vmul.f32 %v141, %v404
      %v463 = vmul.f32 %v142, %v405
      %v464 = vmul.f32 %v143, %v405
      %v465 = vmul.f32 %v144, %v406
      %v466 = vmul.f32 %v145, %v406
      %v467 = vmul.f32 %v146, %v407
      %v468 = vmul.f32 %v147, %v407
      %v469 = vmul.f32 %v148, %v408
      %v470 = vmul.f32 %v149, %v408
      %v471 = vmul.f32 %v150, %v409
      %v472 = vmul.f32 %v151, %v409
      %v473 = vmul.f32 %v152, %v410
      %v474 = vmul.f32 %v153, %v410
      %v475 = vld [vmem:[#allocation6] sm:$0x3]
      %v476 = vunpack.c.l.bf16 %v475
      %v478 = vlaneseq
      %v479 = vshrl.u32 %v478, 7
      %v480 = vsub.s32 0, %v479
      %v481 = vrot.slane %v476, %v480
      %v482 = vlaneseq
      %v483 = vshrl.u32 %v482, 7
      %v484 = vsub.s32 2, %v483
      %v485 = vrot.slane %v476, %v484
      %v488 = vlaneseq
      %v489 = vshrl.u32 %v488, 7
      %v490 = vsub.s32 0, %v489
      %v491 = vrot.slane %v481, %v490
      %v492 = vlaneseq
      %v493 = vshrl.u32 %v492, 7
      %v494 = vsub.s32 0, %v493
      %v495 = vrot.slane %v485, %v494
      %v496 = vmul.f32 %v411, %v491
      %v497 = vmul.f32 %v412, %v495
      %v498 = vmul.f32 %v413, %v491
      %v499 = vmul.f32 %v414, %v495
      %v500 = vmul.f32 %v415, %v491
      %v501 = vmul.f32 %v416, %v495
      %v502 = vmul.f32 %v417, %v491
      %v503 = vmul.f32 %v418, %v495
      %v504 = vmul.f32 %v419, %v491
      %v505 = vmul.f32 %v420, %v495
      %v506 = vmul.f32 %v421, %v491
      %v507 = vmul.f32 %v422, %v495
      %v508 = vmul.f32 %v423, %v491
      %v509 = vmul.f32 %v424, %v495
      %v510 = vmul.f32 %v425, %v491
      %v511 = vmul.f32 %v426, %v495
      %v512 = vmul.f32 %v427, %v491
      %v513 = vmul.f32 %v428, %v495
      %v514 = vmul.f32 %v429, %v491
      %v515 = vmul.f32 %v430, %v495
      %v516 = vmul.f32 %v431, %v491
      %v517 = vmul.f32 %v432, %v495
      %v518 = vmul.f32 %v433, %v491
      %v519 = vmul.f32 %v434, %v495
      %v520 = vmul.f32 %v435, %v491
      %v521 = vmul.f32 %v436, %v495
      %v522 = vmul.f32 %v437, %v491
      %v523 = vmul.f32 %v438, %v495
      %v524 = vmul.f32 %v439, %v491
      %v525 = vmul.f32 %v440, %v495
      %v526 = vmul.f32 %v441, %v491
      %v527 = vmul.f32 %v442, %v495
      %v528 = vmul.f32 %v443, %v491
      %v529 = vmul.f32 %v444, %v495
      %v530 = vmul.f32 %v445, %v491
      %v531 = vmul.f32 %v446, %v495
      %v532 = vmul.f32 %v447, %v491
      %v533 = vmul.f32 %v448, %v495
      %v534 = vmul.f32 %v449, %v491
      %v535 = vmul.f32 %v450, %v495
      %v536 = vmul.f32 %v451, %v491
      %v537 = vmul.f32 %v452, %v495
      %v538 = vmul.f32 %v453, %v491
      %v539 = vmul.f32 %v454, %v495
      %v540 = vmul.f32 %v455, %v491
      %v541 = vmul.f32 %v456, %v495
      %v542 = vmul.f32 %v457, %v491
      %v543 = vmul.f32 %v458, %v495
      %v544 = vmul.f32 %v459, %v491
      %v545 = vmul.f32 %v460, %v495
      %v546 = vmul.f32 %v461, %v491
      %v547 = vmul.f32 %v462, %v495
      %v548 = vmul.f32 %v463, %v491
      %v549 = vmul.f32 %v464, %v495
      %v550 = vmul.f32 %v465, %v491
      %v551 = vmul.f32 %v466, %v495
      %v552 = vmul.f32 %v467, %v491
      %v553 = vmul.f32 %v468, %v495
      %v554 = vmul.f32 %v469, %v491
      %v555 = vmul.f32 %v470, %v495
      %v556 = vmul.f32 %v471, %v491
      %v557 = vmul.f32 %v472, %v495
      %v558 = vmul.f32 %v473, %v491
      %v559 = vmul.f32 %v474, %v495
      %v560 = vpack.c.bf16 %v498, %v496
      %v561 = vpack.c.bf16 %v499, %v497
      %v562 = vpack.c.bf16 %v502, %v500
      %v563 = vpack.c.bf16 %v503, %v501
      %v564 = vpack.c.bf16 %v506, %v504
      %v565 = vpack.c.bf16 %v507, %v505
      %v566 = vpack.c.bf16 %v510, %v508
      %v567 = vpack.c.bf16 %v511, %v509
      %v568 = vpack.c.bf16 %v514, %v512
      %v569 = vpack.c.bf16 %v515, %v513
      %v570 = vpack.c.bf16 %v518, %v516
      %v571 = vpack.c.bf16 %v519, %v517
      %v572 = vpack.c.bf16 %v522, %v520
      %v573 = vpack.c.bf16 %v523, %v521
      %v574 = vpack.c.bf16 %v526, %v524
      %v575 = vpack.c.bf16 %v527, %v525
      %v576 = vpack.c.bf16 %v530, %v528
      %v577 = vpack.c.bf16 %v531, %v529
      %v578 = vpack.c.bf16 %v534, %v532
      %v579 = vpack.c.bf16 %v535, %v533
      %v580 = vpack.c.bf16 %v538, %v536
      %v581 = vpack.c.bf16 %v539, %v537
      %v582 = vpack.c.bf16 %v542, %v540
      %v583 = vpack.c.bf16 %v543, %v541
      %v584 = vpack.c.bf16 %v546, %v544
      %v585 = vpack.c.bf16 %v547, %v545
      %v586 = vpack.c.bf16 %v550, %v548
      %v587 = vpack.c.bf16 %v551, %v549
      %v588 = vpack.c.bf16 %v554, %v552
      %v589 = vpack.c.bf16 %v555, %v553
      %v590 = vpack.c.bf16 %v558, %v556
      %v591 = vpack.c.bf16 %v559, %v557
      %592 = vst [vmem:[#allocation2] sm:$0xff] %v560
      %593 = vst [vmem:[#allocation2 + $0x8] sm:$0xff] %v561
      %594 = vst [vmem:[#allocation2 + $0x10] sm:$0xff] %v562
      %595 = vst [vmem:[#allocation2 + $0x18] sm:$0xff] %v563
      %596 = vst [vmem:[#allocation2 + $0x20] sm:$0xff] %v564
      %597 = vst [vmem:[#allocation2 + $0x28] sm:$0xff] %v565
      %598 = vst [vmem:[#allocation2 + $0x30] sm:$0xff] %v566
      %599 = vst [vmem:[#allocation2 + $0x38] sm:$0xff] %v567
      %600 = vst [vmem:[#allocation2 + $0x40] sm:$0xff] %v568
      %601 = vst [vmem:[#allocation2 + $0x48] sm:$0xff] %v569
      %602 = vst [vmem:[#allocation2 + $0x50] sm:$0xff] %v570
      %603 = vst [vmem:[#allocation2 + $0x58] sm:$0xff] %v571
      %604 = vst [vmem:[#allocation2 + $0x60] sm:$0xff] %v572
      %605 = vst [vmem:[#allocation2 + $0x68] sm:$0xff] %v573
      %606 = vst [vmem:[#allocation2 + $0x70] sm:$0xff] %v574
      %607 = vst [vmem:[#allocation2 + $0x78] sm:$0xff] %v575
      %608 = vst [vmem:[#allocation2 + $0x80] sm:$0xff] %v576
      %609 = vst [vmem:[#allocation2 + $0x88] sm:$0xff] %v577
      %610 = vst [vmem:[#allocation2 + $0x90] sm:$0xff] %v578
      %611 = vst [vmem:[#allocation2 + $0x98] sm:$0xff] %v579
      %612 = vst [vmem:[#allocation2 + $0xa0] sm:$0xff] %v580
      %613 = vst [vmem:[#allocation2 + $0xa8] sm:$0xff] %v581
      %614 = vst [vmem:[#allocation2 + $0xb0] sm:$0xff] %v582
      %615 = vst [vmem:[#allocation2 + $0xb8] sm:$0xff] %v583
      %616 = vst [vmem:[#allocation2 + $0xc0] sm:$0xff] %v584
      %617 = vst [vmem:[#allocation2 + $0xc8] sm:$0xff] %v585
      %618 = vst [vmem:[#allocation2 + $0xd0] sm:$0xff] %v586
      %619 = vst [vmem:[#allocation2 + $0xd8] sm:$0xff] %v587
      %620 = vst [vmem:[#allocation2 + $0xe0] sm:$0xff] %v588
      %621 = vst [vmem:[#allocation2 + $0xe8] sm:$0xff] %v589
      %622 = vst [vmem:[#allocation2 + $0xf0] sm:$0xff] %v590
      %623 = vst [vmem:[#allocation2 + $0xf8] sm:$0xff] %v591
    $region29: #{tpu_custom_call.1} parent=1 // pred_fallthru
      _
    %v624 = vld [vmem:[#allocation2] sm:$0xff]
    %v625 = vld [vmem:[#allocation2 + $0x8] sm:$0xff]
    %v626 = vld [vmem:[#allocation2 + $0x10] sm:$0xff]
    %v627 = vld [vmem:[#allocation2 + $0x18] sm:$0xff]
    %v628 = vld [vmem:[#allocation2 + $0x20] sm:$0xff]
    %v629 = vld [vmem:[#allocation2 + $0x28] sm:$0xff]
    %v630 = vld [vmem:[#allocation2 + $0x30] sm:$0xff]
    %v631 = vld [vmem:[#allocation2 + $0x38] sm:$0xff]
    %v632 = vld [vmem:[#allocation2 + $0x40] sm:$0xff]
    %v633 = vld [vmem:[#allocation2 + $0x48] sm:$0xff]
    %v634 = vld [vmem:[#allocation2 + $0x50] sm:$0xff]
    %v635 = vld [vmem:[#allocation2 + $0x58] sm:$0xff]
    %v636 = vld [vmem:[#allocation2 + $0x60] sm:$0xff]
    %v637 = vld [vmem:[#allocation2 + $0x68] sm:$0xff]
    %v638 = vld [vmem:[#allocation2 + $0x70] sm:$0xff]
    %v639 = vld [vmem:[#allocation2 + $0x78] sm:$0xff]
    %v640 = vld [vmem:[#allocation2 + $0x80] sm:$0xff]
    %v641 = vld [vmem:[#allocation2 + $0x88] sm:$0xff]
    %v642 = vld [vmem:[#allocation2 + $0x90] sm:$0xff]
    %v643 = vld [vmem:[#allocation2 + $0x98] sm:$0xff]
    %v644 = vld [vmem:[#allocation2 + $0xa0] sm:$0xff]
    %v645 = vld [vmem:[#allocation2 + $0xa8] sm:$0xff]
    %v646 = vld [vmem:[#allocation2 + $0xb0] sm:$0xff]
    %v647 = vld [vmem:[#allocation2 + $0xb8] sm:$0xff]
    %v648 = vld [vmem:[#allocation2 + $0xc0] sm:$0xff]
    %v649 = vld [vmem:[#allocation2 + $0xc8] sm:$0xff]
    %v650 = vld [vmem:[#allocation2 + $0xd0] sm:$0xff]
    %v651 = vld [vmem:[#allocation2 + $0xd8] sm:$0xff]
    %v652 = vld [vmem:[#allocation2 + $0xe0] sm:$0xff]
    %v653 = vld [vmem:[#allocation2 + $0xe8] sm:$0xff]
    %v654 = vld [vmem:[#allocation2 + $0xf0] sm:$0xff]
    %v655 = vld [vmem:[#allocation2 + $0xf8] sm:$0xff]
    %v656 = vld [vmem:[#allocation8] sm:$0xff]
    %v657 = vld [vmem:[#allocation8 + $0x8] sm:$0xff]
    %v658 = vld [vmem:[#allocation8 + $0x10] sm:$0xff]
    %v659 = vld [vmem:[#allocation8 + $0x18] sm:$0xff]
    %v660 = vld [vmem:[#allocation8 + $0x20] sm:$0xff]
    %v661 = vld [vmem:[#allocation8 + $0x28] sm:$0xff]
    %v662 = vld [vmem:[#allocation8 + $0x30] sm:$0xff]
    %v663 = vld [vmem:[#allocation8 + $0x38] sm:$0xff]
    %v664 = vld [vmem:[#allocation8 + $0x40] sm:$0xff]
    %v665 = vld [vmem:[#allocation8 + $0x48] sm:$0xff]
    %v666 = vld [vmem:[#allocation8 + $0x50] sm:$0xff]
    %v667 = vld [vmem:[#allocation8 + $0x58] sm:$0xff]
    %v668 = vld [vmem:[#allocation8 + $0x60] sm:$0xff]
    %v669 = vld [vmem:[#allocation8 + $0x68] sm:$0xff]
    %v670 = vld [vmem:[#allocation8 + $0x70] sm:$0xff]
    %v671 = vld [vmem:[#allocation8 + $0x78] sm:$0xff]
    %v672 = vld [vmem:[#allocation8 + $0x80] sm:$0xff]
    %v673 = vld [vmem:[#allocation8 + $0x88] sm:$0xff]
    %v674 = vld [vmem:[#allocation8 + $0x90] sm:$0xff]
    %v675 = vld [vmem:[#allocation8 + $0x98] sm:$0xff]
    %v676 = vld [vmem:[#allocation8 + $0xa0] sm:$0xff]
    %v677 = vld [vmem:[#allocation8 + $0xa8] sm:$0xff]
    %v678 = vld [vmem:[#allocation8 + $0xb0] sm:$0xff]
    %v679 = vld [vmem:[#allocation8 + $0xb8] sm:$0xff]
    %v680 = vld [vmem:[#allocation8 + $0xc0] sm:$0xff]
    %v681 = vld [vmem:[#allocation8 + $0xc8] sm:$0xff]
    %v682 = vld [vmem:[#allocation8 + $0xd0] sm:$0xff]
    %v683 = vld [vmem:[#allocation8 + $0xd8] sm:$0xff]
    %v684 = vld [vmem:[#allocation8 + $0xe0] sm:$0xff]
    %v685 = vld [vmem:[#allocation8 + $0xe8] sm:$0xff]
    %v686 = vld [vmem:[#allocation8 + $0xf0] sm:$0xff]
    %v687 = vld [vmem:[#allocation8 + $0xf8] sm:$0xff]
    %v688 = vld [vmem:[#allocation8 + $0x100] sm:$0xff]
    %v689 = vld [vmem:[#allocation8 + $0x108] sm:$0xff]
    %v690 = vld [vmem:[#allocation8 + $0x110] sm:$0xff]
    %v691 = vld [vmem:[#allocation8 + $0x118] sm:$0xff]
    %v692 = vld [vmem:[#allocation8 + $0x120] sm:$0xff]
    %v693 = vld [vmem:[#allocation8 + $0x128] sm:$0xff]
    %v694 = vld [vmem:[#allocation8 + $0x130] sm:$0xff]
    %v695 = vld [vmem:[#allocation8 + $0x138] sm:$0xff]
    %v696 = vld [vmem:[#allocation8 + $0x140] sm:$0xff]
    %v697 = vld [vmem:[#allocation8 + $0x148] sm:$0xff]
    %v698 = vld [vmem:[#allocation8 + $0x150] sm:$0xff]
    %v699 = vld [vmem:[#allocation8 + $0x158] sm:$0xff]
    %v700 = vld [vmem:[#allocation8 + $0x160] sm:$0xff]
    %v701 = vld [vmem:[#allocation8 + $0x168] sm:$0xff]
    %v702 = vld [vmem:[#allocation8 + $0x170] sm:$0xff]
    %v703 = vld [vmem:[#allocation8 + $0x178] sm:$0xff]
    %v704 = vld [vmem:[#allocation8 + $0x180] sm:$0xff]
    %v705 = vld [vmem:[#allocation8 + $0x188] sm:$0xff]
    %v706 = vld [vmem:[#allocation8 + $0x190] sm:$0xff]
    %v707 = vld [vmem:[#allocation8 + $0x198] sm:$0xff]
    %v708 = vld [vmem:[#allocation8 + $0x1a0] sm:$0xff]
    %v709 = vld [vmem:[#allocation8 + $0x1a8] sm:$0xff]
    %v710 = vld [vmem:[#allocation8 + $0x1b0] sm:$0xff]
    %v711 = vld [vmem:[#allocation8 + $0x1b8] sm:$0xff]
    %v712 = vld [vmem:[#allocation8 + $0x1c0] sm:$0xff]
    %v713 = vld [vmem:[#allocation8 + $0x1c8] sm:$0xff]
    %v714 = vld [vmem:[#allocation8 + $0x1d0] sm:$0xff]
    %v715 = vld [vmem:[#allocation8 + $0x1d8] sm:$0xff]
    %v716 = vld [vmem:[#allocation8 + $0x1e0] sm:$0xff]
    %v717 = vld [vmem:[#allocation8 + $0x1e8] sm:$0xff]
    %v718 = vld [vmem:[#allocation8 + $0x1f0] sm:$0xff]
    %v719 = vld [vmem:[#allocation8 + $0x1f8] sm:$0xff]
    %v784 = vunpack.c.l.b16 %v656
    %v785 = vunpack.c.h.b16 %v656
    %v786 = vunpack.c.l.b16 %v657
    %v787 = vunpack.c.h.b16 %v657
    %v788 = vunpack.c.l.b16 %v658
    %v789 = vunpack.c.h.b16 %v658
    %v790 = vunpack.c.l.b16 %v659
    %v791 = vunpack.c.h.b16 %v659
    %v792 = vunpack.c.l.b16 %v660
    %v793 = vunpack.c.h.b16 %v660
    %v794 = vunpack.c.l.b16 %v661
    %v795 = vunpack.c.h.b16 %v661
    %v796 = vunpack.c.l.b16 %v662
    %v797 = vunpack.c.h.b16 %v662
    %v798 = vunpack.c.l.b16 %v663
    %v799 = vunpack.c.h.b16 %v663
    %v800 = vunpack.c.l.b16 %v664
    %v801 = vunpack.c.h.b16 %v664
    %v802 = vunpack.c.l.b16 %v665
    %v803 = vunpack.c.h.b16 %v665
    %v804 = vunpack.c.l.b16 %v666
    %v805 = vunpack.c.h.b16 %v666
    %v806 = vunpack.c.l.b16 %v667
    %v807 = vunpack.c.h.b16 %v667
    %v808 = vunpack.c.l.b16 %v668
    %v809 = vunpack.c.h.b16 %v668
    %v810 = vunpack.c.l.b16 %v669
    %v811 = vunpack.c.h.b16 %v669
    %v812 = vunpack.c.l.b16 %v670
    %v813 = vunpack.c.h.b16 %v670
    %v814 = vunpack.c.l.b16 %v671
    %v815 = vunpack.c.h.b16 %v671
    %v816 = vunpack.c.l.b16 %v672
    %v817 = vunpack.c.h.b16 %v672
    %v818 = vunpack.c.l.b16 %v673
    %v819 = vunpack.c.h.b16 %v673
    %v820 = vunpack.c.l.b16 %v674
    %v821 = vunpack.c.h.b16 %v674
    %v822 = vunpack.c.l.b16 %v675
    %v823 = vunpack.c.h.b16 %v675
    %v824 = vunpack.c.l.b16 %v676
    %v825 = vunpack.c.h.b16 %v676
    %v826 = vunpack.c.l.b16 %v677
    %v827 = vunpack.c.h.b16 %v677
    %v828 = vunpack.c.l.b16 %v678
    %v829 = vunpack.c.h.b16 %v678
    %v830 = vunpack.c.l.b16 %v679
    %v831 = vunpack.c.h.b16 %v679
    %v832 = vunpack.c.l.b16 %v680
    %v833 = vunpack.c.h.b16 %v680
    %v834 = vunpack.c.l.b16 %v681
    %v835 = vunpack.c.h.b16 %v681
    %v836 = vunpack.c.l.b16 %v682
    %v837 = vunpack.c.h.b16 %v682
    %v838 = vunpack.c.l.b16 %v683
    %v839 = vunpack.c.h.b16 %v683
    %v840 = vunpack.c.l.b16 %v684
    %v841 = vunpack.c.h.b16 %v684
    %v842 = vunpack.c.l.b16 %v685
    %v843 = vunpack.c.h.b16 %v685
    %v844 = vunpack.c.l.b16 %v686
    %v845 = vunpack.c.h.b16 %v686
    %v846 = vunpack.c.l.b16 %v687
    %v847 = vunpack.c.h.b16 %v687
    %v848 = vunpack.c.l.b16 %v688
    %v849 = vunpack.c.h.b16 %v688
    %v850 = vunpack.c.l.b16 %v689
    %v851 = vunpack.c.h.b16 %v689
    %v852 = vunpack.c.l.b16 %v690
    %v853 = vunpack.c.h.b16 %v690
    %v854 = vunpack.c.l.b16 %v691
    %v855 = vunpack.c.h.b16 %v691
    %v856 = vunpack.c.l.b16 %v692
    %v857 = vunpack.c.h.b16 %v692
    %v858 = vunpack.c.l.b16 %v693
    %v859 = vunpack.c.h.b16 %v693
    %v860 = vunpack.c.l.b16 %v694
    %v861 = vunpack.c.h.b16 %v694
    %v862 = vunpack.c.l.b16 %v695
    %v863 = vunpack.c.h.b16 %v695
    %v864 = vunpack.c.l.b16 %v696
    %v865 = vunpack.c.h.b16 %v696
    %v866 = vunpack.c.l.b16 %v697
    %v867 = vunpack.c.h.b16 %v697
    %v868 = vunpack.c.l.b16 %v698
    %v869 = vunpack.c.h.b16 %v698
    %v870 = vunpack.c.l.b16 %v699
    %v871 = vunpack.c.h.b16 %v699
    %v872 = vunpack.c.l.b16 %v700
    %v873 = vunpack.c.h.b16 %v700
    %v874 = vunpack.c.l.b16 %v701
    %v875 = vunpack.c.h.b16 %v701
    %v876 = vunpack.c.l.b16 %v702
    %v877 = vunpack.c.h.b16 %v702
    %v878 = vunpack.c.l.b16 %v703
    %v879 = vunpack.c.h.b16 %v703
    %v880 = vunpack.c.l.b16 %v704
    %v881 = vunpack.c.h.b16 %v704
    %v882 = vunpack.c.l.b16 %v705
    %v883 = vunpack.c.h.b16 %v705
    %v884 = vunpack.c.l.b16 %v706
    %v885 = vunpack.c.h.b16 %v706
    %v886 = vunpack.c.l.b16 %v707
    %v887 = vunpack.c.h.b16 %v707
    %v888 = vunpack.c.l.b16 %v708
    %v889 = vunpack.c.h.b16 %v708
    %v890 = vunpack.c.l.b16 %v709
    %v891 = vunpack.c.h.b16 %v709
    %v892 = vunpack.c.l.b16 %v710
    %v893 = vunpack.c.h.b16 %v710
    %v894 = vunpack.c.l.b16 %v711
    %v895 = vunpack.c.h.b16 %v711
    %v896 = vunpack.c.l.b16 %v712
    %v897 = vunpack.c.h.b16 %v712
    %v898 = vunpack.c.l.b16 %v713
    %v899 = vunpack.c.h.b16 %v713
    %v900 = vunpack.c.l.b16 %v714
    %v901 = vunpack.c.h.b16 %v714
    %v902 = vunpack.c.l.b16 %v715
    %v903 = vunpack.c.h.b16 %v715
    %v904 = vunpack.c.l.b16 %v716
    %v905 = vunpack.c.h.b16 %v716
    %v906 = vunpack.c.l.b16 %v717
    %v907 = vunpack.c.h.b16 %v717
    %v908 = vunpack.c.l.b16 %v718
    %v909 = vunpack.c.h.b16 %v718
    %v910 = vunpack.c.l.b16 %v719
    %v911 = vunpack.c.h.b16 %v719
    %v912 = vpack.c.b16 %v786, %v784
    %v913 = vpack.c.b16 %v787, %v785
    %v914 = vpack.c.b16 %v790, %v788
    %v915 = vpack.c.b16 %v791, %v789
    %v916 = vpack.c.b16 %v794, %v792
    %v917 = vpack.c.b16 %v795, %v793
    %v918 = vpack.c.b16 %v798, %v796
    %v919 = vpack.c.b16 %v799, %v797
    %v920 = vpack.c.b16 %v802, %v800
    %v921 = vpack.c.b16 %v803, %v801
    %v922 = vpack.c.b16 %v806, %v804
    %v923 = vpack.c.b16 %v807, %v805
    %v924 = vpack.c.b16 %v810, %v808
    %v925 = vpack.c.b16 %v811, %v809
    %v926 = vpack.c.b16 %v814, %v812
    %v927 = vpack.c.b16 %v815, %v813
    %v928 = vpack.c.b16 %v818, %v816
    %v929 = vpack.c.b16 %v819, %v817
    %v930 = vpack.c.b16 %v822, %v820
    %v931 = vpack.c.b16 %v823, %v821
    %v932 = vpack.c.b16 %v826, %v824
    %v933 = vpack.c.b16 %v827, %v825
    %v934 = vpack.c.b16 %v830, %v828
    %v935 = vpack.c.b16 %v831, %v829
    %v936 = vpack.c.b16 %v834, %v832
    %v937 = vpack.c.b16 %v835, %v833
    %v938 = vpack.c.b16 %v838, %v836
    %v939 = vpack.c.b16 %v839, %v837
    %v940 = vpack.c.b16 %v842, %v840
    %v941 = vpack.c.b16 %v843, %v841
    %v942 = vpack.c.b16 %v846, %v844
    %v943 = vpack.c.b16 %v847, %v845
    %v944 = vpack.c.b16 %v850, %v848
    %v945 = vpack.c.b16 %v851, %v849
    %v946 = vpack.c.b16 %v854, %v852
    %v947 = vpack.c.b16 %v855, %v853
    %v948 = vpack.c.b16 %v858, %v856
    %v949 = vpack.c.b16 %v859, %v857
    %v950 = vpack.c.b16 %v862, %v860
    %v951 = vpack.c.b16 %v863, %v861
    %v952 = vpack.c.b16 %v866, %v864
    %v953 = vpack.c.b16 %v867, %v865
    %v954 = vpack.c.b16 %v870, %v868
    %v955 = vpack.c.b16 %v871, %v869
    %v956 = vpack.c.b16 %v874, %v872
    %v957 = vpack.c.b16 %v875, %v873
    %v958 = vpack.c.b16 %v878, %v876
    %v959 = vpack.c.b16 %v879, %v877
    %v960 = vpack.c.b16 %v882, %v880
    %v961 = vpack.c.b16 %v883, %v881
    %v962 = vpack.c.b16 %v886, %v884
    %v963 = vpack.c.b16 %v887, %v885
    %v964 = vpack.c.b16 %v890, %v888
    %v965 = vpack.c.b16 %v891, %v889
    %v966 = vpack.c.b16 %v894, %v892
    %v967 = vpack.c.b16 %v895, %v893
    %v968 = vpack.c.b16 %v898, %v896
    %v969 = vpack.c.b16 %v899, %v897
    %v970 = vpack.c.b16 %v902, %v900
    %v971 = vpack.c.b16 %v903, %v901
    %v972 = vpack.c.b16 %v906, %v904
    %v973 = vpack.c.b16 %v907, %v905
    %v974 = vpack.c.b16 %v910, %v908
    %v975 = vpack.c.b16 %v911, %v909
    %1040 = vmatprep.subr.bf16.mxu0 %v913
    %1041 = vmatpush1.bf16.xpose.msra.mxu0 %v912
    %1042 = vmatprep.subr.bf16.mxu0 %v915
    %1043 = vmatpush1.bf16.xpose.msra.mxu0 %v914
    %1044 = vmatprep.subr.bf16.mxu0 %v917
    %1045 = vmatpush1.bf16.xpose.msra.mxu0 %v916
    %1046 = vmatprep.subr.bf16.mxu0 %v919
    %1047 = vmatpush1.bf16.xpose.msra.mxu0 %v918
    %1048 = vmatprep.subr.bf16.mxu0 %v921
    %1049 = vmatpush1.bf16.xpose.msra.mxu0 %v920
    %1050 = vmatprep.subr.bf16.mxu0 %v923
    %1051 = vmatpush1.bf16.xpose.msra.mxu0 %v922
    %1052 = vmatprep.subr.bf16.mxu0 %v925
    %1053 = vmatpush1.bf16.xpose.msra.mxu0 %v924
    %1054 = vmatprep.subr.bf16.mxu0 %v927
    %1055 = vmatpush1.bf16.xpose.msra.mxu0 %v926
    %1056 = vmatprep.subr.bf16.mxu0 %v929
    %1057 = vmatpush1.bf16.xpose.msra.mxu0 %v928
    %1058 = vmatprep.subr.bf16.mxu0 %v931
    %1059 = vmatpush1.bf16.xpose.msra.mxu0 %v930
    %1060 = vmatprep.subr.bf16.mxu0 %v933
    %1061 = vmatpush1.bf16.xpose.msra.mxu0 %v932
    %1062 = vmatprep.subr.bf16.mxu0 %v935
    %1063 = vmatpush1.bf16.xpose.msra.mxu0 %v934
    %1064 = vmatprep.subr.bf16.mxu0 %v937
    %1065 = vmatpush1.bf16.xpose.msra.mxu0 %v936
    %1066 = vmatprep.subr.bf16.mxu0 %v939
    %1067 = vmatpush1.bf16.xpose.msra.mxu0 %v938
    %1068 = vmatprep.subr.bf16.mxu0 %v941
    %1069 = vmatpush1.bf16.xpose.msra.mxu0 %v940
    %1070 = vmatprep.subr.bf16.mxu0 %v943
    %1071 = vmatpush1.bf16.xpose.msra.mxu0 %v942
    %1072 = vmatprep.mubr.bf16.mxu0 %v625
    %1073 = vmatmul.mubr.bf16.gmra.mrb[0].mxu0 %v624
    %v1074 = vpop.f32.mrb[0].mxu0
    %v1075 = vadd.f32 0.0, %v1074
    %v1076 = vpop.f32.mrb[0].mxu0
    %v1077 = vadd.f32 0.0, %v1076
    %v1078 = vpop.f32.mrb[0].mxu0
    %v1079 = vadd.f32 0.0, %v1078
    %v1080 = vpop.f32.mrb[0].mxu0
    %v1081 = vadd.f32 0.0, %v1080
    %1082 = vmatprep.mubr.bf16.mxu0 %v627
    %1083 = vmatmul.mubr.bf16.gmra.mrb[0].mxu0 %v626
    %v1084 = vpop.f32.mrb[0].mxu0
    %v1085 = vadd.f32 0.0, %v1084
    %v1086 = vpop.f32.mrb[0].mxu0
    %v1087 = vadd.f32 0.0, %v1086
    %v1088 = vpop.f32.mrb[0].mxu0
    %v1089 = vadd.f32 0.0, %v1088
    %v1090 = vpop.f32.mrb[0].mxu0
    %v1091 = vadd.f32 0.0, %v1090
    %1092 = vmatprep.mubr.bf16.mxu0 %v629
    %1093 = vmatmul.mubr.bf16.gmra.mrb[0].mxu0 %v628
    %v1094 = vpop.f32.mrb[0].mxu0
    %v1095 = vadd.f32 0.0, %v1094
    %v1096 = vpop.f32.mrb[0].mxu0
    %v1097 = vadd.f32 0.0, %v1096
    %v1098 = vpop.f32.mrb[0].mxu0
    %v1099 = vadd.f32 0.0, %v1098
    %v1100 = vpop.f32.mrb[0].mxu0
    %v1101 = vadd.f32 0.0, %v1100
    %1102 = vmatprep.mubr.bf16.mxu0 %v631
    %1103 = vmatmul.mubr.bf16.gmra.mrb[0].mxu0 %v630
    %v1104 = vpop.f32.mrb[0].mxu0
    %v1105 = vadd.f32 0.0, %v1104
    %v1106 = vpop.f32.mrb[0].mxu0
    %v1107 = vadd.f32 0.0, %v1106
    %v1108 = vpop.f32.mrb[0].mxu0
    %v1109 = vadd.f32 0.0, %v1108
    %v1110 = vpop.f32.mrb[0].mxu0
    %v1111 = vadd.f32 0.0, %v1110
    %1112 = vmatprep.mubr.bf16.mxu0 %v633
    %1113 = vmatmul.mubr.bf16.gmra.mrb[0].mxu0 %v632
    %v1114 = vpop.f32.mrb[0].mxu0
    %v1115 = vadd.f32 0.0, %v1114
    %v1116 = vpop.f32.mrb[0].mxu0
    %v1117 = vadd.f32 0.0, %v1116
    %v1118 = vpop.f32.mrb[0].mxu0
    %v1119 = vadd.f32 0.0, %v1118
    %v1120 = vpop.f32.mrb[0].mxu0
    %v1121 = vadd.f32 0.0, %v1120
    %1122 = vmatprep.mubr.bf16.mxu0 %v635
    %1123 = vmatmul.mubr.bf16.gmra.mrb[0].mxu0 %v634
    %v1124 = vpop.f32.mrb[0].mxu0
    %v1125 = vadd.f32 0.0, %v1124
    %v1126 = vpop.f32.mrb[0].mxu0
    %v1127 = vadd.f32 0.0, %v1126
    %v1128 = vpop.f32.mrb[0].mxu0
    %v1129 = vadd.f32 0.0, %v1128
    %v1130 = vpop.f32.mrb[0].mxu0
    %v1131 = vadd.f32 0.0, %v1130
    %1132 = vmatprep.mubr.bf16.mxu0 %v637
    %1133 = vmatmul.mubr.bf16.gmra.mrb[0].mxu0 %v636
    %v1134 = vpop.f32.mrb[0].mxu0
    %v1135 = vadd.f32 0.0, %v1134
    %v1136 = vpop.f32.mrb[0].mxu0
    %v1137 = vadd.f32 0.0, %v1136
    %v1138 = vpop.f32.mrb[0].mxu0
    %v1139 = vadd.f32 0.0, %v1138
    %v1140 = vpop.f32.mrb[0].mxu0
    %v1141 = vadd.f32 0.0, %v1140
    %1142 = vmatprep.mubr.bf16.mxu0 %v639
    %1143 = vmatmul.mubr.bf16.gmra.mrb[0].mxu0 %v638
    %v1144 = vpop.f32.mrb[0].mxu0
    %v1145 = vadd.f32 0.0, %v1144
    %v1146 = vpop.f32.mrb[0].mxu0
    %v1147 = vadd.f32 0.0, %v1146
    %v1148 = vpop.f32.mrb[0].mxu0
    %v1149 = vadd.f32 0.0, %v1148
    %v1150 = vpop.f32.mrb[0].mxu0
    %v1151 = vadd.f32 0.0, %v1150
    %1152 = vmatprep.mubr.bf16.mxu0 %v641
    %1153 = vmatmul.mubr.bf16.gmra.mrb[0].mxu0 %v640
    %v1154 = vpop.f32.mrb[0].mxu0
    %v1155 = vadd.f32 0.0, %v1154
    %v1156 = vpop.f32.mrb[0].mxu0
    %v1157 = vadd.f32 0.0, %v1156
    %v1158 = vpop.f32.mrb[0].mxu0
    %v1159 = vadd.f32 0.0, %v1158
    %v1160 = vpop.f32.mrb[0].mxu0
    %v1161 = vadd.f32 0.0, %v1160
    %1162 = vmatprep.mubr.bf16.mxu0 %v643
    %1163 = vmatmul.mubr.bf16.gmra.mrb[0].mxu0 %v642
    %v1164 = vpop.f32.mrb[0].mxu0
    %v1165 = vadd.f32 0.0, %v1164
    %v1166 = vpop.f32.mrb[0].mxu0
    %v1167 = vadd.f32 0.0, %v1166
    %v1168 = vpop.f32.mrb[0].mxu0
    %v1169 = vadd.f32 0.0, %v1168
    %v1170 = vpop.f32.mrb[0].mxu0
    %v1171 = vadd.f32 0.0, %v1170
    %1172 = vmatprep.mubr.bf16.mxu0 %v645
    %1173 = vmatmul.mubr.bf16.gmra.mrb[0].mxu0 %v644
    %v1174 = vpop.f32.mrb[0].mxu0
    %v1175 = vadd.f32 0.0, %v1174
    %v1176 = vpop.f32.mrb[0].mxu0
    %v1177 = vadd.f32 0.0, %v1176
    %v1178 = vpop.f32.mrb[0].mxu0
    %v1179 = vadd.f32 0.0, %v1178
    %v1180 = vpop.f32.mrb[0].mxu0
    %v1181 = vadd.f32 0.0, %v1180
    %1182 = vmatprep.mubr.bf16.mxu0 %v647
    %1183 = vmatmul.mubr.bf16.gmra.mrb[0].mxu0 %v646
    %v1184 = vpop.f32.mrb[0].mxu0
    %v1185 = vadd.f32 0.0, %v1184
    %v1186 = vpop.f32.mrb[0].mxu0
    %v1187 = vadd.f32 0.0, %v1186
    %v1188 = vpop.f32.mrb[0].mxu0
    %v1189 = vadd.f32 0.0, %v1188
    %v1190 = vpop.f32.mrb[0].mxu0
    %v1191 = vadd.f32 0.0, %v1190
    %1192 = vmatprep.mubr.bf16.mxu0 %v649
    %1193 = vmatmul.mubr.bf16.gmra.mrb[0].mxu0 %v648
    %v1194 = vpop.f32.mrb[0].mxu0
    %v1195 = vadd.f32 0.0, %v1194
    %v1196 = vpop.f32.mrb[0].mxu0
    %v1197 = vadd.f32 0.0, %v1196
    %v1198 = vpop.f32.mrb[0].mxu0
    %v1199 = vadd.f32 0.0, %v1198
    %v1200 = vpop.f32.mrb[0].mxu0
    %v1201 = vadd.f32 0.0, %v1200
    %1202 = vmatprep.mubr.bf16.mxu0 %v651
    %1203 = vmatmul.mubr.bf16.gmra.mrb[0].mxu0 %v650
    %v1204 = vpop.f32.mrb[0].mxu0
    %v1205 = vadd.f32 0.0, %v1204
    %v1206 = vpop.f32.mrb[0].mxu0
    %v1207 = vadd.f32 0.0, %v1206
    %v1208 = vpop.f32.mrb[0].mxu0
    %v1209 = vadd.f32 0.0, %v1208
    %v1210 = vpop.f32.mrb[0].mxu0
    %v1211 = vadd.f32 0.0, %v1210
    %1212 = vmatprep.mubr.bf16.mxu0 %v653
    %1213 = vmatmul.mubr.bf16.gmra.mrb[0].mxu0 %v652
    %v1214 = vpop.f32.mrb[0].mxu0
    %v1215 = vadd.f32 0.0, %v1214
    %v1216 = vpop.f32.mrb[0].mxu0
    %v1217 = vadd.f32 0.0, %v1216
    %v1218 = vpop.f32.mrb[0].mxu0
    %v1219 = vadd.f32 0.0, %v1218
    %v1220 = vpop.f32.mrb[0].mxu0
    %v1221 = vadd.f32 0.0, %v1220
    %1222 = vmatprep.mubr.bf16.mxu0 %v655
    %1223 = vmatmul.mubr.bf16.gmra.mrb[0].mxu0 %v654
    %v1224 = vpop.f32.mrb[0].mxu0
    %v1225 = vadd.f32 0.0, %v1224
    %v1226 = vpop.f32.mrb[0].mxu0
    %v1227 = vadd.f32 0.0, %v1226
    %v1228 = vpop.f32.mrb[0].mxu0
    %v1229 = vadd.f32 0.0, %v1228
    %v1230 = vpop.f32.mrb[0].mxu0
    %v1231 = vadd.f32 0.0, %v1230
    %1232 = vdwg.mxu0
    %1233 = vmatprep.subr.bf16.mxu0 %v945
    %1234 = vmatpush1.bf16.xpose.msra.mxu0 %v944
    %1235 = vmatprep.subr.bf16.mxu0 %v947
    %1236 = vmatpush1.bf16.xpose.msra.mxu0 %v946
    %1237 = vmatprep.subr.bf16.mxu0 %v949
    %1238 = vmatpush1.bf16.xpose.msra.mxu0 %v948
    %1239 = vmatprep.subr.bf16.mxu0 %v951
    %1240 = vmatpush1.bf16.xpose.msra.mxu0 %v950
    %1241 = vmatprep.subr.bf16.mxu0 %v953
    %1242 = vmatpush1.bf16.xpose.msra.mxu0 %v952
    %1243 = vmatprep.subr.bf16.mxu0 %v955
    %1244 = vmatpush1.bf16.xpose.msra.mxu0 %v954
    %1245 = vmatprep.subr.bf16.mxu0 %v957
    %1246 = vmatpush1.bf16.xpose.msra.mxu0 %v956
    %1247 = vmatprep.subr.bf16.mxu0 %v959
    %1248 = vmatpush1.bf16.xpose.msra.mxu0 %v958
    %1249 = vmatprep.subr.bf16.mxu0 %v961
    %1250 = vmatpush1.bf16.xpose.msra.mxu0 %v960
    %1251 = vmatprep.subr.bf16.mxu0 %v963
    %1252 = vmatpush1.bf16.xpose.msra.mxu0 %v962
    %1253 = vmatprep.subr.bf16.mxu0 %v965
    %1254 = vmatpush1.bf16.xpose.msra.mxu0 %v964
    %1255 = vmatprep.subr.bf16.mxu0 %v967
    %1256 = vmatpush1.bf16.xpose.msra.mxu0 %v966
    %1257 = vmatprep.subr.bf16.mxu0 %v969
    %1258 = vmatpush1.bf16.xpose.msra.mxu0 %v968
    %1259 = vmatprep.subr.bf16.mxu0 %v971
    %1260 = vmatpush1.bf16.xpose.msra.mxu0 %v970
    %1261 = vmatprep.subr.bf16.mxu0 %v973
    %1262 = vmatpush1.bf16.xpose.msra.mxu0 %v972
    %1263 = vmatprep.subr.bf16.mxu0 %v975
    %1264 = vmatpush1.bf16.xpose.msra.mxu0 %v974
    %1265 = vmatprep.mubr.bf16.mxu0 %v625
    %1266 = vmatmul.mubr.bf16.gmra.mrb[0].mxu0 %v624
    %v1267 = vpop.f32.mrb[0].mxu0
    %v1268 = vadd.f32 0.0, %v1267
    %v1269 = vpop.f32.mrb[0].mxu0
    %v1270 = vadd.f32 0.0, %v1269
    %v1271 = vpop.f32.mrb[0].mxu0
    %v1272 = vadd.f32 0.0, %v1271
    %v1273 = vpop.f32.mrb[0].mxu0
    %v1274 = vadd.f32 0.0, %v1273
    %1275 = vmatprep.mubr.bf16.mxu0 %v627
    %1276 = vmatmul.mubr.bf16.gmra.mrb[0].mxu0 %v626
    %v1277 = vpop.f32.mrb[0].mxu0
    %v1278 = vadd.f32 0.0, %v1277
    %v1279 = vpop.f32.mrb[0].mxu0
    %v1280 = vadd.f32 0.0, %v1279
    %v1281 = vpop.f32.mrb[0].mxu0
    %v1282 = vadd.f32 0.0, %v1281
    %v1283 = vpop.f32.mrb[0].mxu0
    %v1284 = vadd.f32 0.0, %v1283
    %1285 = vmatprep.mubr.bf16.mxu0 %v629
    %1286 = vmatmul.mubr.bf16.gmra.mrb[0].mxu0 %v628
    %v1287 = vpop.f32.mrb[0].mxu0
    %v1288 = vadd.f32 0.0, %v1287
    %v1289 = vpop.f32.mrb[0].mxu0
    %v1290 = vadd.f32 0.0, %v1289
    %v1291 = vpop.f32.mrb[0].mxu0
    %v1292 = vadd.f32 0.0, %v1291
    %v1293 = vpop.f32.mrb[0].mxu0
    %v1294 = vadd.f32 0.0, %v1293
    %1295 = vmatprep.mubr.bf16.mxu0 %v631
    %1296 = vmatmul.mubr.bf16.gmra.mrb[0].mxu0 %v630
    %v1297 = vpop.f32.mrb[0].mxu0
    %v1298 = vadd.f32 0.0, %v1297
    %v1299 = vpop.f32.mrb[0].mxu0
    %v1300 = vadd.f32 0.0, %v1299
    %v1301 = vpop.f32.mrb[0].mxu0
    %v1302 = vadd.f32 0.0, %v1301
    %v1303 = vpop.f32.mrb[0].mxu0
    %v1304 = vadd.f32 0.0, %v1303
    %1305 = vmatprep.mubr.bf16.mxu0 %v633
    %1306 = vmatmul.mubr.bf16.gmra.mrb[0].mxu0 %v632
    %v1307 = vpop.f32.mrb[0].mxu0
    %v1308 = vadd.f32 0.0, %v1307
    %v1309 = vpop.f32.mrb[0].mxu0
    %v1310 = vadd.f32 0.0, %v1309
    %v1311 = vpop.f32.mrb[0].mxu0
    %v1312 = vadd.f32 0.0, %v1311
    %v1313 = vpop.f32.mrb[0].mxu0
    %v1314 = vadd.f32 0.0, %v1313
    %1315 = vmatprep.mubr.bf16.mxu0 %v635
    %1316 = vmatmul.mubr.bf16.gmra.mrb[0].mxu0 %v634
    %v1317 = vpop.f32.mrb[0].mxu0
    %v1318 = vadd.f32 0.0, %v1317
    %v1319 = vpop.f32.mrb[0].mxu0
    %v1320 = vadd.f32 0.0, %v1319
    %v1321 = vpop.f32.mrb[0].mxu0
    %v1322 = vadd.f32 0.0, %v1321
    %v1323 = vpop.f32.mrb[0].mxu0
    %v1324 = vadd.f32 0.0, %v1323
    %1325 = vmatprep.mubr.bf16.mxu0 %v637
    %1326 = vmatmul.mubr.bf16.gmra.mrb[0].mxu0 %v636
    %v1327 = vpop.f32.mrb[0].mxu0
    %v1328 = vadd.f32 0.0, %v1327
    %v1329 = vpop.f32.mrb[0].mxu0
    %v1330 = vadd.f32 0.0, %v1329
    %v1331 = vpop.f32.mrb[0].mxu0
    %v1332 = vadd.f32 0.0, %v1331
    %v1333 = vpop.f32.mrb[0].mxu0
    %v1334 = vadd.f32 0.0, %v1333
    %1335 = vmatprep.mubr.bf16.mxu0 %v639
    %1336 = vmatmul.mubr.bf16.gmra.mrb[0].mxu0 %v638
    %v1337 = vpop.f32.mrb[0].mxu0
    %v1338 = vadd.f32 0.0, %v1337
    %v1339 = vpop.f32.mrb[0].mxu0
    %v1340 = vadd.f32 0.0, %v1339
    %v1341 = vpop.f32.mrb[0].mxu0
    %v1342 = vadd.f32 0.0, %v1341
    %v1343 = vpop.f32.mrb[0].mxu0
    %v1344 = vadd.f32 0.0, %v1343
    %1345 = vmatprep.mubr.bf16.mxu0 %v641
    %1346 = vmatmul.mubr.bf16.gmra.mrb[0].mxu0 %v640
    %v1347 = vpop.f32.mrb[0].mxu0
    %v1348 = vadd.f32 0.0, %v1347
    %v1349 = vpop.f32.mrb[0].mxu0
    %v1350 = vadd.f32 0.0, %v1349
    %v1351 = vpop.f32.mrb[0].mxu0
    %v1352 = vadd.f32 0.0, %v1351
    %v1353 = vpop.f32.mrb[0].mxu0
    %v1354 = vadd.f32 0.0, %v1353
    %1355 = vmatprep.mubr.bf16.mxu0 %v643
    %1356 = vmatmul.mubr.bf16.gmra.mrb[0].mxu0 %v642
    %v1357 = vpop.f32.mrb[0].mxu0
    %v1358 = vadd.f32 0.0, %v1357
    %v1359 = vpop.f32.mrb[0].mxu0
    %v1360 = vadd.f32 0.0, %v1359
    %v1361 = vpop.f32.mrb[0].mxu0
    %v1362 = vadd.f32 0.0, %v1361
    %v1363 = vpop.f32.mrb[0].mxu0
    %v1364 = vadd.f32 0.0, %v1363
    %1365 = vmatprep.mubr.bf16.mxu0 %v645
    %1366 = vmatmul.mubr.bf16.gmra.mrb[0].mxu0 %v644
    %v1367 = vpop.f32.mrb[0].mxu0
    %v1368 = vadd.f32 0.0, %v1367
    %v1369 = vpop.f32.mrb[0].mxu0
    %v1370 = vadd.f32 0.0, %v1369
    %v1371 = vpop.f32.mrb[0].mxu0
    %v1372 = vadd.f32 0.0, %v1371
    %v1373 = vpop.f32.mrb[0].mxu0
    %v1374 = vadd.f32 0.0, %v1373
    %1375 = vmatprep.mubr.bf16.mxu0 %v647
    %1376 = vmatmul.mubr.bf16.gmra.mrb[0].mxu0 %v646
    %v1377 = vpop.f32.mrb[0].mxu0
    %v1378 = vadd.f32 0.0, %v1377
    %v1379 = vpop.f32.mrb[0].mxu0
    %v1380 = vadd.f32 0.0, %v1379
    %v1381 = vpop.f32.mrb[0].mxu0
    %v1382 = vadd.f32 0.0, %v1381
    %v1383 = vpop.f32.mrb[0].mxu0
    %v1384 = vadd.f32 0.0, %v1383
    %1385 = vmatprep.mubr.bf16.mxu0 %v649
    %1386 = vmatmul.mubr.bf16.gmra.mrb[0].mxu0 %v648
    %v1387 = vpop.f32.mrb[0].mxu0
    %v1388 = vadd.f32 0.0, %v1387
    %v1389 = vpop.f32.mrb[0].mxu0
    %v1390 = vadd.f32 0.0, %v1389
    %v1391 = vpop.f32.mrb[0].mxu0
    %v1392 = vadd.f32 0.0, %v1391
    %v1393 = vpop.f32.mrb[0].mxu0
    %v1394 = vadd.f32 0.0, %v1393
    %1395 = vmatprep.mubr.bf16.mxu0 %v651
    %1396 = vmatmul.mubr.bf16.gmra.mrb[0].mxu0 %v650
    %v1397 = vpop.f32.mrb[0].mxu0
    %v1398 = vadd.f32 0.0, %v1397
    %v1399 = vpop.f32.mrb[0].mxu0
    %v1400 = vadd.f32 0.0, %v1399
    %v1401 = vpop.f32.mrb[0].mxu0
    %v1402 = vadd.f32 0.0, %v1401
    %v1403 = vpop.f32.mrb[0].mxu0
    %v1404 = vadd.f32 0.0, %v1403
    %1405 = vmatprep.mubr.bf16.mxu0 %v653
    %1406 = vmatmul.mubr.bf16.gmra.mrb[0].mxu0 %v652
    %v1407 = vpop.f32.mrb[0].mxu0
    %v1408 = vadd.f32 0.0, %v1407
    %v1409 = vpop.f32.mrb[0].mxu0
    %v1410 = vadd.f32 0.0, %v1409
    %v1411 = vpop.f32.mrb[0].mxu0
    %v1412 = vadd.f32 0.0, %v1411
    %v1413 = vpop.f32.mrb[0].mxu0
    %v1414 = vadd.f32 0.0, %v1413
    %1415 = vmatprep.mubr.bf16.mxu0 %v655
    %1416 = vmatmul.mubr.bf16.gmra.mrb[0].mxu0 %v654
    %v1417 = vpop.f32.mrb[0].mxu0
    %v1418 = vadd.f32 0.0, %v1417
    %v1419 = vpop.f32.mrb[0].mxu0
    %v1420 = vadd.f32 0.0, %v1419
    %v1421 = vpop.f32.mrb[0].mxu0
    %v1422 = vadd.f32 0.0, %v1421
    %v1423 = vpop.f32.mrb[0].mxu0
    %v1424 = vadd.f32 0.0, %v1423
    %1425 = vdwg.mxu0
    %v1426 = vpack.c.bf16 %v1079, %v1075
    %v1427 = vpack.c.bf16 %v1081, %v1077
    %v1428 = vpack.c.bf16 %v1272, %v1268
    %v1429 = vpack.c.bf16 %v1274, %v1270
    %v1430 = vpack.c.bf16 %v1089, %v1085
    %v1431 = vpack.c.bf16 %v1091, %v1087
    %v1432 = vpack.c.bf16 %v1282, %v1278
    %v1433 = vpack.c.bf16 %v1284, %v1280
    %v1434 = vpack.c.bf16 %v1099, %v1095
    %v1435 = vpack.c.bf16 %v1101, %v1097
    %v1436 = vpack.c.bf16 %v1292, %v1288
    %v1437 = vpack.c.bf16 %v1294, %v1290
    %v1438 = vpack.c.bf16 %v1109, %v1105
    %v1439 = vpack.c.bf16 %v1111, %v1107
    %v1440 = vpack.c.bf16 %v1302, %v1298
    %v1441 = vpack.c.bf16 %v1304, %v1300
    %v1442 = vpack.c.bf16 %v1119, %v1115
    %v1443 = vpack.c.bf16 %v1121, %v1117
    %v1444 = vpack.c.bf16 %v1312, %v1308
    %v1445 = vpack.c.bf16 %v1314, %v1310
    %v1446 = vpack.c.bf16 %v1129, %v1125
    %v1447 = vpack.c.bf16 %v1131, %v1127
    %v1448 = vpack.c.bf16 %v1322, %v1318
    %v1449 = vpack.c.bf16 %v1324, %v1320
    %v1450 = vpack.c.bf16 %v1139, %v1135
    %v1451 = vpack.c.bf16 %v1141, %v1137
    %v1452 = vpack.c.bf16 %v1332, %v1328
    %v1453 = vpack.c.bf16 %v1334, %v1330
    %v1454 = vpack.c.bf16 %v1149, %v1145
    %v1455 = vpack.c.bf16 %v1151, %v1147
    %v1456 = vpack.c.bf16 %v1342, %v1338
    %v1457 = vpack.c.bf16 %v1344, %v1340
    %v1458 = vpack.c.bf16 %v1159, %v1155
    %v1459 = vpack.c.bf16 %v1161, %v1157
    %v1460 = vpack.c.bf16 %v1352, %v1348
    %v1461 = vpack.c.bf16 %v1354, %v1350
    %v1462 = vpack.c.bf16 %v1169, %v1165
    %v1463 = vpack.c.bf16 %v1171, %v1167
    %v1464 = vpack.c.bf16 %v1362, %v1358
    %v1465 = vpack.c.bf16 %v1364, %v1360
    %v1466 = vpack.c.bf16 %v1179, %v1175
    %v1467 = vpack.c.bf16 %v1181, %v1177
    %v1468 = vpack.c.bf16 %v1372, %v1368
    %v1469 = vpack.c.bf16 %v1374, %v1370
    %v1470 = vpack.c.bf16 %v1189, %v1185
    %v1471 = vpack.c.bf16 %v1191, %v1187
    %v1472 = vpack.c.bf16 %v1382, %v1378
    %v1473 = vpack.c.bf16 %v1384, %v1380
    %v1474 = vpack.c.bf16 %v1199, %v1195
    %v1475 = vpack.c.bf16 %v1201, %v1197
    %v1476 = vpack.c.bf16 %v1392, %v1388
    %v1477 = vpack.c.bf16 %v1394, %v1390
    %v1478 = vpack.c.bf16 %v1209, %v1205
    %v1479 = vpack.c.bf16 %v1211, %v1207
    %v1480 = vpack.c.bf16 %v1402, %v1398
    %v1481 = vpack.c.bf16 %v1404, %v1400
    %v1482 = vpack.c.bf16 %v1219, %v1215
    %v1483 = vpack.c.bf16 %v1221, %v1217
    %v1484 = vpack.c.bf16 %v1412, %v1408
    %v1485 = vpack.c.bf16 %v1414, %v1410
    %v1486 = vpack.c.bf16 %v1229, %v1225
    %v1487 = vpack.c.bf16 %v1231, %v1227
    %v1488 = vpack.c.bf16 %v1422, %v1418
    %v1489 = vpack.c.bf16 %v1424, %v1420
    %v1554 = vunpack.c.l.b16 %v1426
    %v1555 = vunpack.c.l.b16 %v1427
    %v1556 = vunpack.c.l.b16 %v1428
    %v1557 = vunpack.c.l.b16 %v1429
    %v1558 = vunpack.c.h.b16 %v1426
    %v1559 = vunpack.c.h.b16 %v1427
    %v1560 = vunpack.c.h.b16 %v1428
    %v1561 = vunpack.c.h.b16 %v1429
    %v1562 = vunpack.c.l.b16 %v1430
    %v1563 = vunpack.c.l.b16 %v1431
    %v1564 = vunpack.c.l.b16 %v1432
    %v1565 = vunpack.c.l.b16 %v1433
    %v1566 = vunpack.c.h.b16 %v1430
    %v1567 = vunpack.c.h.b16 %v1431
    %v1568 = vunpack.c.h.b16 %v1432
    %v1569 = vunpack.c.h.b16 %v1433
    %v1570 = vunpack.c.l.b16 %v1434
    %v1571 = vunpack.c.l.b16 %v1435
    %v1572 = vunpack.c.l.b16 %v1436
    %v1573 = vunpack.c.l.b16 %v1437
    %v1574 = vunpack.c.h.b16 %v1434
    %v1575 = vunpack.c.h.b16 %v1435
    %v1576 = vunpack.c.h.b16 %v1436
    %v1577 = vunpack.c.h.b16 %v1437
    %v1578 = vunpack.c.l.b16 %v1438
    %v1579 = vunpack.c.l.b16 %v1439
    %v1580 = vunpack.c.l.b16 %v1440
    %v1581 = vunpack.c.l.b16 %v1441
    %v1582 = vunpack.c.h.b16 %v1438
    %v1583 = vunpack.c.h.b16 %v1439
    %v1584 = vunpack.c.h.b16 %v1440
    %v1585 = vunpack.c.h.b16 %v1441
    %v1586 = vunpack.c.l.b16 %v1442
    %v1587 = vunpack.c.l.b16 %v1443
    %v1588 = vunpack.c.l.b16 %v1444
    %v1589 = vunpack.c.l.b16 %v1445
    %v1590 = vunpack.c.h.b16 %v1442
    %v1591 = vunpack.c.h.b16 %v1443
    %v1592 = vunpack.c.h.b16 %v1444
    %v1593 = vunpack.c.h.b16 %v1445
    %v1594 = vunpack.c.l.b16 %v1446
    %v1595 = vunpack.c.l.b16 %v1447
    %v1596 = vunpack.c.l.b16 %v1448
    %v1597 = vunpack.c.l.b16 %v1449
    %v1598 = vunpack.c.h.b16 %v1446
    %v1599 = vunpack.c.h.b16 %v1447
    %v1600 = vunpack.c.h.b16 %v1448
    %v1601 = vunpack.c.h.b16 %v1449
    %v1602 = vunpack.c.l.b16 %v1450
    %v1603 = vunpack.c.l.b16 %v1451
    %v1604 = vunpack.c.l.b16 %v1452
    %v1605 = vunpack.c.l.b16 %v1453
    %v1606 = vunpack.c.h.b16 %v1450
    %v1607 = vunpack.c.h.b16 %v1451
    %v1608 = vunpack.c.h.b16 %v1452
    %v1609 = vunpack.c.h.b16 %v1453
    %v1610 = vunpack.c.l.b16 %v1454
    %v1611 = vunpack.c.l.b16 %v1455
    %v1612 = vunpack.c.l.b16 %v1456
    %v1613 = vunpack.c.l.b16 %v1457
    %v1614 = vunpack.c.h.b16 %v1454
    %v1615 = vunpack.c.h.b16 %v1455
    %v1616 = vunpack.c.h.b16 %v1456
    %v1617 = vunpack.c.h.b16 %v1457
    %v1618 = vunpack.c.l.b16 %v1458
    %v1619 = vunpack.c.l.b16 %v1459
    %v1620 = vunpack.c.l.b16 %v1460
    %v1621 = vunpack.c.l.b16 %v1461
    %v1622 = vunpack.c.h.b16 %v1458
    %v1623 = vunpack.c.h.b16 %v1459
    %v1624 = vunpack.c.h.b16 %v1460
    %v1625 = vunpack.c.h.b16 %v1461
    %v1626 = vunpack.c.l.b16 %v1462
    %v1627 = vunpack.c.l.b16 %v1463
    %v1628 = vunpack.c.l.b16 %v1464
    %v1629 = vunpack.c.l.b16 %v1465
    %v1630 = vunpack.c.h.b16 %v1462
    %v1631 = vunpack.c.h.b16 %v1463
    %v1632 = vunpack.c.h.b16 %v1464
    %v1633 = vunpack.c.h.b16 %v1465
    %v1634 = vunpack.c.l.b16 %v1466
    %v1635 = vunpack.c.l.b16 %v1467
    %v1636 = vunpack.c.l.b16 %v1468
    %v1637 = vunpack.c.l.b16 %v1469
    %v1638 = vunpack.c.h.b16 %v1466
    %v1639 = vunpack.c.h.b16 %v1467
    %v1640 = vunpack.c.h.b16 %v1468
    %v1641 = vunpack.c.h.b16 %v1469
    %v1642 = vunpack.c.l.b16 %v1470
    %v1643 = vunpack.c.l.b16 %v1471
    %v1644 = vunpack.c.l.b16 %v1472
    %v1645 = vunpack.c.l.b16 %v1473
    %v1646 = vunpack.c.h.b16 %v1470
    %v1647 = vunpack.c.h.b16 %v1471
    %v1648 = vunpack.c.h.b16 %v1472
    %v1649 = vunpack.c.h.b16 %v1473
    %v1650 = vunpack.c.l.b16 %v1474
    %v1651 = vunpack.c.l.b16 %v1475
    %v1652 = vunpack.c.l.b16 %v1476
    %v1653 = vunpack.c.l.b16 %v1477
    %v1654 = vunpack.c.h.b16 %v1474
    %v1655 = vunpack.c.h.b16 %v1475
    %v1656 = vunpack.c.h.b16 %v1476
    %v1657 = vunpack.c.h.b16 %v1477
    %v1658 = vunpack.c.l.b16 %v1478
    %v1659 = vunpack.c.l.b16 %v1479
    %v1660 = vunpack.c.l.b16 %v1480
    %v1661 = vunpack.c.l.b16 %v1481
    %v1662 = vunpack.c.h.b16 %v1478
    %v1663 = vunpack.c.h.b16 %v1479
    %v1664 = vunpack.c.h.b16 %v1480
    %v1665 = vunpack.c.h.b16 %v1481
    %v1666 = vunpack.c.l.b16 %v1482
    %v1667 = vunpack.c.l.b16 %v1483
    %v1668 = vunpack.c.l.b16 %v1484
    %v1669 = vunpack.c.l.b16 %v1485
    %v1670 = vunpack.c.h.b16 %v1482
    %v1671 = vunpack.c.h.b16 %v1483
    %v1672 = vunpack.c.h.b16 %v1484
    %v1673 = vunpack.c.h.b16 %v1485
    %v1674 = vunpack.c.l.b16 %v1486
    %v1675 = vunpack.c.l.b16 %v1487
    %v1676 = vunpack.c.l.b16 %v1488
    %v1677 = vunpack.c.l.b16 %v1489
    %v1678 = vunpack.c.h.b16 %v1486
    %v1679 = vunpack.c.h.b16 %v1487
    %v1680 = vunpack.c.h.b16 %v1488
    %v1681 = vunpack.c.h.b16 %v1489
    %v1682 = vpack.c.b16 %v1555, %v1554
    %v1683 = vpack.c.b16 %v1557, %v1556
    %v1684 = vpack.c.b16 %v1559, %v1558
    %v1685 = vpack.c.b16 %v1561, %v1560
    %v1686 = vpack.c.b16 %v1563, %v1562
    %v1687 = vpack.c.b16 %v1565, %v1564
    %v1688 = vpack.c.b16 %v1567, %v1566
    %v1689 = vpack.c.b16 %v1569, %v1568
    %v1690 = vpack.c.b16 %v1571, %v1570
    %v1691 = vpack.c.b16 %v1573, %v1572
    %v1692 = vpack.c.b16 %v1575, %v1574
    %v1693 = vpack.c.b16 %v1577, %v1576
    %v1694 = vpack.c.b16 %v1579, %v1578
    %v1695 = vpack.c.b16 %v1581, %v1580
    %v1696 = vpack.c.b16 %v1583, %v1582
    %v1697 = vpack.c.b16 %v1585, %v1584
    %v1698 = vpack.c.b16 %v1587, %v1586
    %v1699 = vpack.c.b16 %v1589, %v1588
    %v1700 = vpack.c.b16 %v1591, %v1590
    %v1701 = vpack.c.b16 %v1593, %v1592
    %v1702 = vpack.c.b16 %v1595, %v1594
    %v1703 = vpack.c.b16 %v1597, %v1596
    %v1704 = vpack.c.b16 %v1599, %v1598
    %v1705 = vpack.c.b16 %v1601, %v1600
    %v1706 = vpack.c.b16 %v1603, %v1602
    %v1707 = vpack.c.b16 %v1605, %v1604
    %v1708 = vpack.c.b16 %v1607, %v1606
    %v1709 = vpack.c.b16 %v1609, %v1608
    %v1710 = vpack.c.b16 %v1611, %v1610
    %v1711 = vpack.c.b16 %v1613, %v1612
    %v1712 = vpack.c.b16 %v1615, %v1614
    %v1713 = vpack.c.b16 %v1617, %v1616
    %v1714 = vpack.c.b16 %v1619, %v1618
    %v1715 = vpack.c.b16 %v1621, %v1620
    %v1716 = vpack.c.b16 %v1623, %v1622
    %v1717 = vpack.c.b16 %v1625, %v1624
    %v1718 = vpack.c.b16 %v1627, %v1626
    %v1719 = vpack.c.b16 %v1629, %v1628
    %v1720 = vpack.c.b16 %v1631, %v1630
    %v1721 = vpack.c.b16 %v1633, %v1632
    %v1722 = vpack.c.b16 %v1635, %v1634
    %v1723 = vpack.c.b16 %v1637, %v1636
    %v1724 = vpack.c.b16 %v1639, %v1638
    %v1725 = vpack.c.b16 %v1641, %v1640
    %v1726 = vpack.c.b16 %v1643, %v1642
    %v1727 = vpack.c.b16 %v1645, %v1644
    %v1728 = vpack.c.b16 %v1647, %v1646
    %v1729 = vpack.c.b16 %v1649, %v1648
    %v1730 = vpack.c.b16 %v1651, %v1650
    %v1731 = vpack.c.b16 %v1653, %v1652
    %v1732 = vpack.c.b16 %v1655, %v1654
    %v1733 = vpack.c.b16 %v1657, %v1656
    %v1734 = vpack.c.b16 %v1659, %v1658
    %v1735 = vpack.c.b16 %v1661, %v1660
    %v1736 = vpack.c.b16 %v1663, %v1662
    %v1737 = vpack.c.b16 %v1665, %v1664
    %v1738 = vpack.c.b16 %v1667, %v1666
    %v1739 = vpack.c.b16 %v1669, %v1668
    %v1740 = vpack.c.b16 %v1671, %v1670
    %v1741 = vpack.c.b16 %v1673, %v1672
    %v1742 = vpack.c.b16 %v1675, %v1674
    %v1743 = vpack.c.b16 %v1677, %v1676
    %v1744 = vpack.c.b16 %v1679, %v1678
    %v1745 = vpack.c.b16 %v1681, %v1680
    %1810 = vst [vmem:[#allocation9] sm:$0xff] %v1682
    %1811 = vst [vmem:[#allocation9 + $0x8] sm:$0xff] %v1683
    %1812 = vst [vmem:[#allocation9 + $0x10] sm:$0xff] %v1684
    %1813 = vst [vmem:[#allocation9 + $0x18] sm:$0xff] %v1685
    %1814 = vst [vmem:[#allocation9 + $0x20] sm:$0xff] %v1686
    %1815 = vst [vmem:[#allocation9 + $0x28] sm:$0xff] %v1687
    %1816 = vst [vmem:[#allocation9 + $0x30] sm:$0xff] %v1688
    %1817 = vst [vmem:[#allocation9 + $0x38] sm:$0xff] %v1689
    %1818 = vst [vmem:[#allocation9 + $0x40] sm:$0xff] %v1690
    %1819 = vst [vmem:[#allocation9 + $0x48] sm:$0xff] %v1691
    %1820 = vst [vmem:[#allocation9 + $0x50] sm:$0xff] %v1692
    %1821 = vst [vmem:[#allocation9 + $0x58] sm:$0xff] %v1693
    %1822 = vst [vmem:[#allocation9 + $0x60] sm:$0xff] %v1694
    %1823 = vst [vmem:[#allocation9 + $0x68] sm:$0xff] %v1695
    %1824 = vst [vmem:[#allocation9 + $0x70] sm:$0xff] %v1696
    %1825 = vst [vmem:[#allocation9 + $0x78] sm:$0xff] %v1697
    %1826 = vst [vmem:[#allocation9 + $0x80] sm:$0xff] %v1698
    %1827 = vst [vmem:[#allocation9 + $0x88] sm:$0xff] %v1699
    %1828 = vst [vmem:[#allocation9 + $0x90] sm:$0xff] %v1700
    %1829 = vst [vmem:[#allocation9 + $0x98] sm:$0xff] %v1701
    %1830 = vst [vmem:[#allocation9 + $0xa0] sm:$0xff] %v1702
    %1831 = vst [vmem:[#allocation9 + $0xa8] sm:$0xff] %v1703
    %1832 = vst [vmem:[#allocation9 + $0xb0] sm:$0xff] %v1704
    %1833 = vst [vmem:[#allocation9 + $0xb8] sm:$0xff] %v1705
    %1834 = vst [vmem:[#allocation9 + $0xc0] sm:$0xff] %v1706
    %1835 = vst [vmem:[#allocation9 + $0xc8] sm:$0xff] %v1707
    %1836 = vst [vmem:[#allocation9 + $0xd0] sm:$0xff] %v1708
    %1837 = vst [vmem:[#allocation9 + $0xd8] sm:$0xff] %v1709
    %1838 = vst [vmem:[#allocation9 + $0xe0] sm:$0xff] %v1710
    %1839 = vst [vmem:[#allocation9 + $0xe8] sm:$0xff] %v1711
    %1840 = vst [vmem:[#allocation9 + $0xf0] sm:$0xff] %v1712
    %1841 = vst [vmem:[#allocation9 + $0xf8] sm:$0xff] %v1713
    %1842 = vst [vmem:[#allocation9 + $0x100] sm:$0xff] %v1714
    %1843 = vst [vmem:[#allocation9 + $0x108] sm:$0xff] %v1715
    %1844 = vst [vmem:[#allocation9 + $0x110] sm:$0xff] %v1716
    %1845 = vst [vmem:[#allocation9 + $0x118] sm:$0xff] %v1717
    %1846 = vst [vmem:[#allocation9 + $0x120] sm:$0xff] %v1718
    %1847 = vst [vmem:[#allocation9 + $0x128] sm:$0xff] %v1719
    %1848 = vst [vmem:[#allocation9 + $0x130] sm:$0xff] %v1720
    %1849 = vst [vmem:[#allocation9 + $0x138] sm:$0xff] %v1721
    %1850 = vst [vmem:[#allocation9 + $0x140] sm:$0xff] %v1722
    %1851 = vst [vmem:[#allocation9 + $0x148] sm:$0xff] %v1723
    %1852 = vst [vmem:[#allocation9 + $0x150] sm:$0xff] %v1724
    %1853 = vst [vmem:[#allocation9 + $0x158] sm:$0xff] %v1725
    %1854 = vst [vmem:[#allocation9 + $0x160] sm:$0xff] %v1726
    %1855 = vst [vmem:[#allocation9 + $0x168] sm:$0xff] %v1727
    %1856 = vst [vmem:[#allocation9 + $0x170] sm:$0xff] %v1728
    %1857 = vst [vmem:[#allocation9 + $0x178] sm:$0xff] %v1729
    %1858 = vst [vmem:[#allocation9 + $0x180] sm:$0xff] %v1730
    %1859 = vst [vmem:[#allocation9 + $0x188] sm:$0xff] %v1731
    %1860 = vst [vmem:[#allocation9 + $0x190] sm:$0xff] %v1732
    %1861 = vst [vmem:[#allocation9 + $0x198] sm:$0xff] %v1733
    %1862 = vst [vmem:[#allocation9 + $0x1a0] sm:$0xff] %v1734
    %1863 = vst [vmem:[#allocation9 + $0x1a8] sm:$0xff] %v1735
    %1864 = vst [vmem:[#allocation9 + $0x1b0] sm:$0xff] %v1736
    %1865 = vst [vmem:[#allocation9 + $0x1b8] sm:$0xff] %v1737
    %1866 = vst [vmem:[#allocation9 + $0x1c0] sm:$0xff] %v1738
    %1867 = vst [vmem:[#allocation9 + $0x1c8] sm:$0xff] %v1739
    %1868 = vst [vmem:[#allocation9 + $0x1d0] sm:$0xff] %v1740
    %1869 = vst [vmem:[#allocation9 + $0x1d8] sm:$0xff] %v1741
    %1870 = vst [vmem:[#allocation9 + $0x1e0] sm:$0xff] %v1742
    %1871 = vst [vmem:[#allocation9 + $0x1e8] sm:$0xff] %v1743
    %1872 = vst [vmem:[#allocation9 + $0x1f0] sm:$0xff] %v1744
    %1873 = vst [vmem:[#allocation9 + $0x1f8] sm:$0xff] %v1745
    // Predicated region
    $region30: #{tpu_custom_call.1} parent=1 // pred_check
      _
    $region31: #{tpu_custom_call.1} parent=1 // pred_check_branch
      %1875 = sbr.rel (0) target = $region33
    $region32: #{tpu_custom_call.1} parent=1 // pred_region
      %s1877 = ssub.s32 8192, 8192
      %1878 = vsyncadd [#allocation5], %s1877
      %s1879 = sshll.u32 [#allocation9], 4
      %s1880 = int_to_ptr.vmem [resolvable:$true] %s1879
      %1885 = dma.vmem_to_hbm [thread:$0]  %s1880, 8192, %s3, [#allocation5], 256, 256, 16
    $region33: #{tpu_custom_call.1} parent=1 // pred_fallthru
      _
    // Predicated region
    $region34: #{tpu_custom_call.1} parent=1 // pred_check
      _
    $region35: #{tpu_custom_call.1} parent=1 // pred_check_branch
      %1887 = sbr.rel (0) target = $region37
    $region36: #{tpu_custom_call.1} parent=1 // pred_region
      %1888 = dma.done [#allocation5], 8192
    $region37: #{tpu_custom_call.1} parent=1 // pred_fallthru
      _
    %1889 = vsyncpa [#allocation4], 1
    %1890 = vsyncpa [#allocation7], 1
    %1891 = vsyncpa [#allocation5], 1

</llo_original>
